<compile_context>
chip_gen: v5e
topology: v5e:2x2
jax: 0.10.0
libtpu: 0.0.40
codegen_flags: <defaults>
</compile_context>

<pallas_src>
import functools

import jax
import jax.numpy as jnp
from jax import lax
from jax.experimental import pallas as pl
from jax.experimental.pallas import tpu as pltpu

_LANE = 128
_SUB = 8


def _round_up(n, m):
    return ((n + m - 1) // m) * m


def _vmem_capacity():
    try:
        info = pltpu.get_tpu_info()
        cap = int(getattr(info, "vmem_capacity_bytes", 0) or 0)
        if cap > 0:
            return cap
    except Exception:
        pass
    return 64 * 1024 * 1024          # conservative (v7x-sized) fallback


# ---------------------------------------------------------------------------
# Kernel: one (batch, row-tile) grid step.
#   groups: static tuple of (out_channel_offset, n_cols, terms)
#   terms : static tuple of (row_shift s, col_shift r, weight_index)
# For each group the terms' dots are accumulated directly into the f32 output
# block.  A term with row shift s takes its first (TH - s) output rows from
# the main block and its last s rows from the 2-row halo block (two partial
# dots on disjoint row ranges -> no window concatenation, no scratch).
# ---------------------------------------------------------------------------
def _upsample_conv_kernel(xm_ref, xh_ref, w_ref, b_ref, o_ref, *,
                          groups, tile_h, w_out):
    # xm_ref : (1, TH,  WIN_W, K)   main rows of the prepared input (bf16/f32)
    # xh_ref : (1, 2,   WIN_W, K)   2-row halo directly below the main rows
    # w_ref  : (n_w, K, n_cols)     folded per-phase/per-tap weights
    # b_ref  : (1, C_TOT)           f32 bias in the folded output layout
    # o_ref  : (1, TH, W, C_TOT)    f32 output (phases folded into channels)
    th = tile_h
    k = xm_ref.shape[-1]
    for off, n_cols, terms in groups:
        bias = b_ref[0, off:off + n_cols]                    # (n_cols,) f32
        for idx, (s, r, wi) in enumerate(terms):
            wmat = w_ref[wi]                                 # (K, n_cols)
            first = idx == 0
            nm = th - s                                      # rows from main
            if nm > 0:
                lhs = xm_ref[0, s:th, r:r + w_out, :]        # (nm, W, K)
                part = jnp.dot(lhs.reshape(nm * w_out, k), wmat,
                               preferred_element_type=jnp.float32)
                part = part.reshape(nm, w_out, n_cols)
                if first:
                    o_ref[0, 0:nm, :, off:off + n_cols] = part + bias
                else:
                    o_ref[0, 0:nm, :, off:off + n_cols] += part
            if s > 0:                                        # rows from halo
                lhs = xh_ref[0, 0:s, r:r + w_out, :]         # (s, W, K)
                part = jnp.dot(lhs.reshape(s * w_out, k), wmat,
                               preferred_element_type=jnp.float32)
                part = part.reshape(s, w_out, n_cols)
                if first:
                    o_ref[0, nm:th, :, off:off + n_cols] = part + bias
                else:
                    o_ref[0, nm:th, :, off:off + n_cols] += part


# ---------------------------------------------------------------------------
# pallas_call wrapper
# ---------------------------------------------------------------------------
def _run_pallas(x_in, w_mats, bias_full, groups, tile_h, out_w, tiles_major):
    b, rows, win_w, k = x_in.shape
    h_pad = rows - 2
    n_tiles = h_pad // tile_h
    n_w, _, n_cols = w_mats.shape
    c_tot = bias_full.shape[-1]
    hb = tile_h // 2                      # halo (block-size-2) index unit
    ib = jnp.dtype(x_in.dtype).itemsize

    if tiles_major:
        grid = (n_tiles, b)
        bsel = lambda g0, g1: g1
        tsel = lambda g0, g1: g0
    else:
        grid = (b, n_tiles)
        bsel = lambda g0, g1: g0
        tsel = lambda g0, g1: g1

    main_spec = pl.BlockSpec(
        (1, tile_h, win_w, k),
        lambda g0, g1: (bsel(g0, g1), tsel(g0, g1), 0, 0))
    halo_spec = pl.BlockSpec(
        (1, 2, win_w, k),
        lambda g0, g1: (bsel(g0, g1), (tsel(g0, g1) + 1) * hb, 0, 0))
    w_spec = pl.BlockSpec((n_w, k, n_cols), lambda g0, g1: (0, 0, 0))
    b_spec = pl.BlockSpec((1, c_tot), lambda g0, g1: (0, 0))
    out_spec = pl.BlockSpec(
        (1, tile_h, out_w, c_tot),
        lambda g0, g1: (bsel(g0, g1), tsel(g0, g1), 0, 0))

    # VMEM budget: double-buffered blocks + resident weights + in-kernel temps.
    in_main = tile_h * win_w * k * ib
    in_halo = 2 * win_w * k * ib
    out_blk = tile_h * out_w * c_tot * 4
    w_blk = n_w * k * n_cols * ib
    temps = 2 * tile_h * out_w * k * ib + 2 * tile_h * out_w * n_cols * 4
    est = 2 * (in_main + in_halo + out_blk + w_blk) + temps + (2 << 20)
    cap = _vmem_capacity()
    vmem_limit = int(min(int(cap * 0.9), max(32 << 20, int(est * 1.25))))

    total_terms = sum(len(t) for _, _, t in groups)
    flops = int(2 * b * h_pad * out_w * total_terms * k * n_cols)
    bytes_accessed = int(x_in.size * ib + w_mats.size * ib
                         + bias_full.size * 4 + b * h_pad * out_w * c_tot * 4)

    kernel = functools.partial(_upsample_conv_kernel, groups=groups,
                               tile_h=tile_h, w_out=out_w)
    return pl.pallas_call(
        kernel,
        out_shape=jax.ShapeDtypeStruct((b, h_pad, out_w, c_tot), jnp.float32),
        grid_spec=pltpu.PrefetchScalarGridSpec(
            num_scalar_prefetch=0,
            grid=grid,
            in_specs=[main_spec, halo_spec, w_spec, b_spec],
            out_specs=out_spec),
        compiler_params=pltpu.CompilerParams(
            dimension_semantics=("parallel", "parallel"),
            vmem_limit_bytes=vmem_limit),
        cost_estimate=pl.CostEstimate(flops=flops, transcendentals=0,
                                      bytes_accessed=bytes_accessed),
    )(x_in, x_in, w_mats, bias_full)


# ---------------------------------------------------------------------------
# Module wrapper (PyTorch semantics, NCHW in / NCHW out).
# ---------------------------------------------------------------------------
# Padding of the ORIGINAL-resolution image that reproduces PyTorch's
# padding_mode applied to the 2x-upsampled image ("replicate" and "reflect"
# on the upsampled image both reduce to edge padding of the original image).
_ORIG_PAD_MODE = {"zeros": "constant", "replicate": "edge",
                  "reflect": "edge", "circular": "wrap"}

# _SEL[phase][d][k] == 1 iff 3x3 tap k contributes to 2x2 window offset d for
# that output phase (same selection matrix for rows/ky and columns/kx).
_SEL = (((1.0, 0.0, 0.0), (0.0, 1.0, 1.0)),
        ((1.0, 1.0, 0.0), (0.0, 0.0, 1.0)))

_PHASES = ((0, 0), (0, 1), (1, 0), (1, 1))      # p = 2*py + px


def _pick_tile_h(h, wp, k, c_tot, n_w, n_cols, in_bytes, cap, batch):
    """Largest even tile_h whose working set fits ~55% of VMEM capacity."""
    budget = int(cap * 0.55)
    win_w = wp + 2
    fixed = (2 * n_w * k * n_cols * in_bytes          # resident weights (x2)
             + 2 * 2 * win_w * k * in_bytes           # halo blocks (x2)
             + (2 << 20))                             # slack
    per_row = (2 * win_w * k * in_bytes               # main input (x2 buffers)
               + 2 * wp * c_tot * 4                   # output block (x2)
               + 2 * wp * k * in_bytes                # lhs slice temporaries
               + 2 * wp * n_cols * 4)                 # dot partials
    th = (budget - fixed) // max(per_row, 1)
    th = int(max(2, min(th, _round_up(h, 2))))
    th = (th // 2) * 2
    # keep both v7x TensorCores busy for tiny-batch inference shapes
    if batch == 1 and th >= h and h > 2:
        th = max(2, _round_up((h + 1) // 2, 2))
    return th


@functools.partial(jax.jit,
                   static_argnames=("padding_mode", "tile_h", "compute_dtype"))
def upsample_forward(x_nchw, weight_oihw, bias, padding_mode="zeros",
                     tile_h=None, compute_dtype=jnp.bfloat16):
    """Equivalent of Upsample.forward.

    x_nchw      : (B, C, H, W) float32
    weight_oihw : (Cout, Cin, 3, 3) float32   (PyTorch Conv2d weight layout)
    bias        : (Cout,) float32
    returns     : (B, Cout, 2H, 2W) in x's dtype
    """
    b, cin, h, w = x_nchw.shape
    cout = weight_oihw.shape[0]
    out_dtype = x_nchw.dtype
    in_bytes = jnp.dtype(compute_dtype).itemsize

    # ---- fold upsample + 3x3 conv into 4 phase-specific 2x2 kernels (f32)
    w_hwio = jnp.transpose(weight_oihw, (2, 3, 1, 0)).astype(jnp.float32)
    sel = jnp.asarray(_SEL, dtype=jnp.float32)
    w_phase = jnp.einsum("pak,qbl,klio->pqabio", sel, sel, w_hwio)
    w_phase = w_phase.reshape(4, 4, cin, cout)        # (phase, tap, ci, co)

    small = (cin <= _LANE // 4) and (cout <= _LANE // 4)
    wp = _round_up(w, _SUB)                           # lane-friendly width

    if small:
        # taps packed into lanes, all 4 phases folded into one 128-wide group
        k = _round_up(4 * cin, _LANE)
        cb = cout
        c_tot = _round_up(4 * cout, _LANE)
        n_cols, n_w = c_tot, 4
        w_k = w_phase.reshape(4, 4 * cin, cout)
        w_mats = jnp.zeros((4, k, c_tot), jnp.float32)
        for p in range(4):
            w_mats = w_mats.at[p, :4 * cin, p * cout:(p + 1) * cout].set(w_k[p])
        bias_full = jnp.pad(jnp.tile(bias.astype(jnp.float32), 4),
                            (0, c_tot - 4 * cout)).reshape(1, c_tot)
        groups = ((0, c_tot,
                   tuple((py, px, 2 * py + px) for (py, px) in _PHASES)),)
    else:
        # per-tap accumulated dots, phases folded into 4*Cout_p output lanes
        k = _round_up(cin, _LANE)
        cout_p = _round_up(cout, _LANE)
        cb = cout_p
        c_tot = 4 * cout_p
        n_cols, n_w = cout_p, 16
        w_mats = jnp.pad(w_phase, ((0, 0), (0, 0), (0, k - cin),
                                   (0, cout_p - cout))).reshape(16, k, cout_p)
        bias_full = jnp.tile(jnp.pad(bias.astype(jnp.float32),
                                     (0, cout_p - cout)), 4).reshape(1, c_tot)
        groups = tuple(
            (p * cout_p, cout_p,
             tuple((py + dy, px + dx, p * 4 + dy * 2 + dx)
                   for dy in (0, 1) for dx in (0, 1)))
            for p, (py, px) in enumerate(_PHASES))

    # ---- tile selection (generation-aware VMEM budget) and row padding
    cap = _vmem_capacity()
    if tile_h is None:
        tile_h = _pick_tile_h(h, wp, k, c_tot, n_w, n_cols, in_bytes, cap, b)
    tile_h = int(tile_h)
    assert tile_h >= 2 and tile_h % 2 == 0, tile_h
    h_pad = _round_up(h, tile_h)
    n_tiles = h_pad // tile_h

    # ---- input prep (original resolution only; no 2x image is materialized)
    x = jnp.transpose(x_nchw, (0, 2, 3, 1))                           # NHWC
    x = jnp.pad(x, ((0, 0), (1, 1), (1, 1), (0, 0)),
                mode=_ORIG_PAD_MODE[padding_mode])                    # ring pad
    if small:
        pieces = [x[:, dy:dy + h + 1, dx:dx + w + 1, :]
                  for dy in (0, 1) for dx in (0, 1)]
        xt = jnp.concatenate(pieces, axis=-1)           # (B, H+1, W+1, 4*Cin)
        xt = jnp.pad(xt, ((0, 0), (0, h_pad + 2 - (h + 1)),
                          (0, wp + 1 - (w + 1)), (0, k - 4 * cin)))
        x_in = xt.astype(compute_dtype)                 # (B, Hp+2, Wp+1, K)
    else:
        x = jnp.pad(x, ((0, 0), (0, h_pad - h), (0, wp - w), (0, k - cin)))
        x_in = x.astype(compute_dtype)                  # (B, Hp+2, Wp+2, K)

    w_mats = w_mats.astype(compute_dtype)
    tiles_major = n_tiles >= b

    y = _run_pallas(x_in, w_mats, bias_full, groups, tile_h, wp, tiles_major)
    # y: (B, h_pad, wp, c_tot) f32, channel layout p*cb + co, p = 2*py + px

    # ---- single fused crop + transpose epilogue: phases -> spatial, NCHW out
    y = y[:, :h, :w, :4 * cb]
    y = y.reshape(b, h, w, 2, 2, cb)
    y = jnp.transpose(y, (0, 5, 1, 3, 2, 4)).reshape(b, cb, 2 * h, 2 * w)
    y = y[:, :cout]
    return y.astype(out_dtype)


# ---------------------------------------------------------------------------
# Reference (literal transcription of the PyTorch module) + self-check
# ---------------------------------------------------------------------------
def _reference_forward(x_nchw, weight_oihw, bias, padding_mode):
    up_pad = {"zeros": "constant", "replicate": "edge",
              "reflect": "reflect", "circular": "wrap"}[padding_mode]
    x = jnp.transpose(x_nchw, (0, 2, 3, 1))
    x = jnp.repeat(jnp.repeat(x, 2, axis=1), 2, axis=2)               # nearest 2x
    x = jnp.pad(x, ((0, 0), (1, 1), (1, 1), (0, 0)), mode=up_pad)
    w_hwio = jnp.transpose(weight_oihw, (2, 3, 1, 0))
    y = lax.conv_general_dilated(
        x, w_hwio, window_strides=(1, 1), padding="VALID",
        dimension_numbers=("NHWC", "HWIO", "NHWC"))
    y = y + bias[None, None, None, :]
    return jnp.transpose(y, (0, 3, 1, 2))


if __name__ == "__main__":
    key = jax.random.PRNGKey(0)
    k_x, k_w, k_b, k_xs, k_x2, k_w2, k_b2 = jax.random.split(key, 7)

    # ---- main run: small-channel (tap-packed) path, 2 row tiles, bf16 compute
    B, C, H, W = 2, 4, 16, 16
    x = jax.random.normal(k_x, (B, C, H, W), dtype=jnp.float32)
    bound = 1.0 / ((C * 9) ** 0.5)
    weight = jax.random.uniform(k_w, (C, C, 3, 3), jnp.float32, -bound, bound)
    bias = jax.random.uniform(k_b, (C,), jnp.float32, -bound, bound)

    out = upsample_forward(x, weight, bias, padding_mode="zeros", tile_h=8)
    out = jax.block_until_ready(out)
    assert out.shape == (B, C, 2 * H, 2 * W), out.shape

    # ---- correctness, small-C path (f32 compute, exact): all padding modes,
    #      non-multiple-of-8 W and non-multiple-of-tile H (pad + crop paths)
    xs = jax.random.normal(k_xs, (1, C, 10, 12), jnp.float32)
    for mode in ("zeros", "reflect", "replicate", "circular"):
        got = upsample_forward(xs, weight, bias, padding_mode=mode,
                               tile_h=4, compute_dtype=jnp.float32)
        ref = _reference_forward(xs, weight, bias, mode)
        err = float(jnp.max(jnp.abs(got - ref)))
        assert err < 1e-4, (mode, err)

    # bf16 compute path (default) vs f32 reference: loose tolerance
    got = upsample_forward(xs, weight, bias, padding_mode="zeros", tile_h=4)
    ref = _reference_forward(xs, weight, bias, "zeros")
    assert float(jnp.max(jnp.abs(got - ref))) < 5e-2

    # ---- correctness, large-C (per-tap) path, batch=1 (tiles-major grid)
    C2, H2, W2 = 64, 12, 12
    x2 = jax.random.normal(k_x2, (1, C2, H2, W2), jnp.float32)
    b2 = 1.0 / ((C2 * 9) ** 0.5)
    w2 = jax.random.uniform(k_w2, (C2, C2, 3, 3), jnp.float32, -b2, b2)
    bias2 = jax.random.uniform(k_b2, (C2,), jnp.float32, -b2, b2)
    got = upsample_forward(x2, w2, bias2, padding_mode="reflect",
                           tile_h=4, compute_dtype=jnp.float32)
    ref = _reference_forward(x2, w2, bias2, "reflect")
    assert float(jnp.max(jnp.abs(got - ref))) < 1e-4
    got = upsample_forward(x2, w2, bias2, padding_mode="zeros")  # bf16, auto tile
    ref = _reference_forward(x2, w2, bias2, "zeros")
    assert float(jnp.max(jnp.abs(got - ref))) < 5e-2

    print("KERNEL_OK")
</pallas_src>

<mosaic_0001>
module attributes {stable_mosaic.version = 11 : i64} {
  func.func @_upsample_conv_kernel(%arg0: i32, %arg1: i32, %arg2: memref<1x8x17x128xbf16, #tpu.memory_space<vmem>>, %arg3: memref<1x2x17x128xbf16, #tpu.memory_space<vmem>>, %arg4: memref<4x128x128xbf16, #tpu.memory_space<vmem>>, %arg5: memref<1x128xf32, #tpu.memory_space<vmem>>, %arg6: memref<1x8x16x128xf32, #tpu.memory_space<vmem>>) attributes {dimension_semantics = [#tpu.dimension_semantics<parallel>, #tpu.dimension_semantics<parallel>], iteration_bounds = array<i64: 2, 2>, scalar_prefetch = 0 : i64, scratch_operands = 0 : i64, tpu.core_type = #tpu.core_type<tc>, window_params = [{transform_indices = @transform_0, window_bounds = array<i64: 1, 8, 17, 128>}, {transform_indices = @transform_1, window_bounds = array<i64: 1, 2, 17, 128>}, {pipeline_mode = #tpu.pipeline_mode<synchronous>, transform_indices = @transform_2, window_bounds = array<i64: 4, 128, 128>}, {pipeline_mode = #tpu.pipeline_mode<synchronous>, transform_indices = @transform_3, window_bounds = array<i64: 1, 128>}, {transform_indices = @transform_4, window_bounds = array<i64: 1, 8, 16, 128>}]} {
    %c0 = arith.constant 0 : index
    %c0_0 = arith.constant 0 : index
    %0 = vector.load %arg5[%c0, %c0_0] : memref<1x128xf32, #tpu.memory_space<vmem>>, vector<1x128xf32>
    %1 = vector.shape_cast %0 : vector<1x128xf32> to vector<128xf32>
    %c0_1 = arith.constant 0 : index
    %c0_2 = arith.constant 0 : index
    %c0_3 = arith.constant 0 : index
    %2 = vector.load %arg4[%c0_1, %c0_2, %c0_3] : memref<4x128x128xbf16, #tpu.memory_space<vmem>>, vector<1x128x128xbf16>
    %3 = vector.shape_cast %2 : vector<1x128x128xbf16> to vector<128x128xbf16>
    %c0_4 = arith.constant 0 : index
    %c0_5 = arith.constant 0 : index
    %c0_6 = arith.constant 0 : index
    %c0_7 = arith.constant 0 : index
    %4 = vector.load %arg2[%c0_4, %c0_5, %c0_6, %c0_7] : memref<1x8x17x128xbf16, #tpu.memory_space<vmem>>, vector<1x8x16x128xbf16>
    %5 = vector.shape_cast %4 : vector<1x8x16x128xbf16> to vector<8x16x128xbf16>
    %6 = vector.shape_cast %5 : vector<8x16x128xbf16> to vector<128x128xbf16>
    %cst = arith.constant dense<0.000000e+00> : vector<128x128xf32>
    %7 = tpu.matmul %6, %3, %cst {dimension_numbers = #tpu.dot_dimension_numbers<[1], [0], [0], [1], [0, 0, 1, 1], [], []>} : vector<128x128xbf16>, vector<128x128xbf16>, vector<128x128xf32> -> vector<128x128xf32>
    %8 = vector.shape_cast %7 : vector<128x128xf32> to vector<8x16x128xf32>
    %9 = vector.shape_cast %1 : vector<128xf32> to vector<1x1x128xf32>
    %10 = vector.broadcast %9 : vector<1x1x128xf32> to vector<8x16x128xf32>
    %11 = arith.addf %8, %10 : vector<8x16x128xf32>
    %c0_8 = arith.constant 0 : index
    %c0_9 = arith.constant 0 : index
    %c0_10 = arith.constant 0 : index
    %c0_11 = arith.constant 0 : index
    %12 = vector.load %arg6[%c0_8, %c0_9, %c0_10, %c0_11] : memref<1x8x16x128xf32, #tpu.memory_space<vmem>>, vector<1x8x16x128xf32>
    %13 = vector.shape_cast %12 : vector<1x8x16x128xf32> to vector<8x16x128xf32>
    %14 = vector.shape_cast %11 : vector<8x16x128xf32> to vector<1x8x16x128xf32>
    tpu.vector_store %arg6[%c0_8, %c0_9, %c0_10, %c0_11], %14 {strides = array<i32>} : memref<1x8x16x128xf32, #tpu.memory_space<vmem>>, vector<1x8x16x128xf32>,
    %c1 = arith.constant 1 : index
    %c0_12 = arith.constant 0 : index
    %c0_13 = arith.constant 0 : index
    %15 = vector.load %arg4[%c1, %c0_12, %c0_13] : memref<4x128x128xbf16, #tpu.memory_space<vmem>>, vector<1x128x128xbf16>
    %16 = vector.shape_cast %15 : vector<1x128x128xbf16> to vector<128x128xbf16>
    %c0_14 = arith.constant 0 : index
    %c0_15 = arith.constant 0 : index
    %c1_16 = arith.constant 1 : index
    %c0_17 = arith.constant 0 : index
    %17 = vector.load %arg2[%c0_14, %c0_15, %c1_16, %c0_17] : memref<1x8x17x128xbf16, #tpu.memory_space<vmem>>, vector<1x8x16x128xbf16>
    %18 = vector.shape_cast %17 : vector<1x8x16x128xbf16> to vector<8x16x128xbf16>
    %19 = vector.shape_cast %18 : vector<8x16x128xbf16> to vector<128x128xbf16>
    %cst_18 = arith.constant dense<0.000000e+00> : vector<128x128xf32>
    %20 = tpu.matmul %19, %16, %cst_18 {dimension_numbers = #tpu.dot_dimension_numbers<[1], [0], [0], [1], [0, 0, 1, 1], [], []>} : vector<128x128xbf16>, vector<128x128xbf16>, vector<128x128xf32> -> vector<128x128xf32>
    %21 = vector.shape_cast %20 : vector<128x128xf32> to vector<8x16x128xf32>
    %c0_19 = arith.constant 0 : index
    %c0_20 = arith.constant 0 : index
    %c0_21 = arith.constant 0 : index
    %c0_22 = arith.constant 0 : index
    %22 = vector.load %arg6[%c0_19, %c0_20, %c0_21, %c0_22] : memref<1x8x16x128xf32, #tpu.memory_space<vmem>>, vector<1x8x16x128xf32>
    %23 = vector.shape_cast %22 : vector<1x8x16x128xf32> to vector<8x16x128xf32>
    %24 = arith.addf %23, %21 : vector<8x16x128xf32>
    %c0_23 = arith.constant 0 : index
    %c0_24 = arith.constant 0 : index
    %c0_25 = arith.constant 0 : index
    %c0_26 = arith.constant 0 : index
    %25 = vector.load %arg6[%c0_23, %c0_24, %c0_25, %c0_26] : memref<1x8x16x128xf32, #tpu.memory_space<vmem>>, vector<1x8x16x128xf32>
    %26 = vector.shape_cast %25 : vector<1x8x16x128xf32> to vector<8x16x128xf32>
    %27 = vector.shape_cast %24 : vector<8x16x128xf32> to vector<1x8x16x128xf32>
    tpu.vector_store %arg6[%c0_23, %c0_24, %c0_25, %c0_26], %27 {strides = array<i32>} : memref<1x8x16x128xf32, #tpu.memory_space<vmem>>, vector<1x8x16x128xf32>,
    %c2 = arith.constant 2 : index
    %c0_27 = arith.constant 0 : index
    %c0_28 = arith.constant 0 : index
    %28 = vector.load %arg4[%c2, %c0_27, %c0_28] : memref<4x128x128xbf16, #tpu.memory_space<vmem>>, vector<1x128x128xbf16>
    %29 = vector.shape_cast %28 : vector<1x128x128xbf16> to vector<128x128xbf16>
    %c0_29 = arith.constant 0 : index
    %c1_30 = arith.constant 1 : index
    %c0_31 = arith.constant 0 : index
    %c0_32 = arith.constant 0 : index
    %30 = vector.load %arg2[%c0_29, %c1_30, %c0_31, %c0_32] : memref<1x8x17x128xbf16, #tpu.memory_space<vmem>>, vector<1x7x16x128xbf16>
    %31 = vector.shape_cast %30 : vector<1x7x16x128xbf16> to vector<7x16x128xbf16>
    %32 = vector.shape_cast %31 : vector<7x16x128xbf16> to vector<112x128xbf16>
    %cst_33 = arith.constant dense<0.000000e+00> : vector<112x128xf32>
    %33 = tpu.matmul %32, %29, %cst_33 {dimension_numbers = #tpu.dot_dimension_numbers<[1], [0], [0], [1], [0, 0, 1, 1], [], []>} : vector<112x128xbf16>, vector<128x128xbf16>, vector<112x128xf32> -> vector<112x128xf32>
    %34 = vector.shape_cast %33 : vector<112x128xf32> to vector<7x16x128xf32>
    %c0_34 = arith.constant 0 : index
    %c0_35 = arith.constant 0 : index
    %c0_36 = arith.constant 0 : index
    %c0_37 = arith.constant 0 : index
    %35 = vector.load %arg6[%c0_34, %c0_35, %c0_36, %c0_37] : memref<1x8x16x128xf32, #tpu.memory_space<vmem>>, vector<1x7x16x128xf32>
    %36 = vector.shape_cast %35 : vector<1x7x16x128xf32> to vector<7x16x128xf32>
    %37 = arith.addf %36, %34 : vector<7x16x128xf32>
    %c0_38 = arith.constant 0 : index
    %c0_39 = arith.constant 0 : index
    %c0_40 = arith.constant 0 : index
    %c0_41 = arith.constant 0 : index
    %38 = vector.load %arg6[%c0_38, %c0_39, %c0_40, %c0_41] : memref<1x8x16x128xf32, #tpu.memory_space<vmem>>, vector<1x7x16x128xf32>
    %39 = vector.shape_cast %38 : vector<1x7x16x128xf32> to vector<7x16x128xf32>
    %40 = vector.shape_cast %37 : vector<7x16x128xf32> to vector<1x7x16x128xf32>
    tpu.vector_store %arg6[%c0_38, %c0_39, %c0_40, %c0_41], %40 {strides = array<i32>} : memref<1x8x16x128xf32, #tpu.memory_space<vmem>>, vector<1x7x16x128xf32>,
    %c0_42 = arith.constant 0 : index
    %c0_43 = arith.constant 0 : index
    %c0_44 = arith.constant 0 : index
    %c0_45 = arith.constant 0 : index
    %41 = vector.load %arg3[%c0_42, %c0_43, %c0_44, %c0_45] : memref<1x2x17x128xbf16, #tpu.memory_space<vmem>>, vector<1x1x16x128xbf16>
    %42 = vector.shape_cast %41 : vector<1x1x16x128xbf16> to vector<1x16x128xbf16>
    %43 = vector.shape_cast %42 : vector<1x16x128xbf16> to vector<16x128xbf16>
    %cst_46 = arith.constant dense<0.000000e+00> : vector<16x128xf32>
    %44 = tpu.matmul %43, %29, %cst_46 {dimension_numbers = #tpu.dot_dimension_numbers<[1], [0], [0], [1], [0, 0, 1, 1], [], []>} : vector<16x128xbf16>, vector<128x128xbf16>, vector<16x128xf32> -> vector<16x128xf32>
    %45 = vector.shape_cast %44 : vector<16x128xf32> to vector<1x16x128xf32>
    %c0_47 = arith.constant 0 : index
    %c7 = arith.constant 7 : index
    %c0_48 = arith.constant 0 : index
    %c0_49 = arith.constant 0 : index
    %46 = vector.load %arg6[%c0_47, %c7, %c0_48, %c0_49] : memref<1x8x16x128xf32, #tpu.memory_space<vmem>>, vector<1x1x16x128xf32>
    %47 = vector.shape_cast %46 : vector<1x1x16x128xf32> to vector<1x16x128xf32>
    %48 = arith.addf %47, %45 : vector<1x16x128xf32>
    %c0_50 = arith.constant 0 : index
    %c7_51 = arith.constant 7 : index
    %c0_52 = arith.constant 0 : index
    %c0_53 = arith.constant 0 : index
    %49 = vector.load %arg6[%c0_50, %c7_51, %c0_52, %c0_53] : memref<1x8x16x128xf32, #tpu.memory_space<vmem>>, vector<1x1x16x128xf32>
    %50 = vector.shape_cast %49 : vector<1x1x16x128xf32> to vector<1x16x128xf32>
    %51 = vector.shape_cast %48 : vector<1x16x128xf32> to vector<1x1x16x128xf32>
    tpu.vector_store %arg6[%c0_50, %c7_51, %c0_52, %c0_53], %51 {strides = array<i32>} : memref<1x8x16x128xf32, #tpu.memory_space<vmem>>, vector<1x1x16x128xf32>,
    %c3 = arith.constant 3 : index
    %c0_54 = arith.constant 0 : index
    %c0_55 = arith.constant 0 : index
    %52 = vector.load %arg4[%c3, %c0_54, %c0_55] : memref<4x128x128xbf16, #tpu.memory_space<vmem>>, vector<1x128x128xbf16>
    %53 = vector.shape_cast %52 : vector<1x128x128xbf16> to vector<128x128xbf16>
    %c0_56 = arith.constant 0 : index
    %c1_57 = arith.constant 1 : index
    %c1_58 = arith.constant 1 : index
    %c0_59 = arith.constant 0 : index
    %54 = vector.load %arg2[%c0_56, %c1_57, %c1_58, %c0_59] : memref<1x8x17x128xbf16, #tpu.memory_space<vmem>>, vector<1x7x16x128xbf16>
    %55 = vector.shape_cast %54 : vector<1x7x16x128xbf16> to vector<7x16x128xbf16>
    %56 = vector.shape_cast %55 : vector<7x16x128xbf16> to vector<112x128xbf16>
    %cst_60 = arith.constant dense<0.000000e+00> : vector<112x128xf32>
    %57 = tpu.matmul %56, %53, %cst_60 {dimension_numbers = #tpu.dot_dimension_numbers<[1], [0], [0], [1], [0, 0, 1, 1], [], []>} : vector<112x128xbf16>, vector<128x128xbf16>, vector<112x128xf32> -> vector<112x128xf32>
    %58 = vector.shape_cast %57 : vector<112x128xf32> to vector<7x16x128xf32>
    %c0_61 = arith.constant 0 : index
    %c0_62 = arith.constant 0 : index
    %c0_63 = arith.constant 0 : index
    %c0_64 = arith.constant 0 : index
    %59 = vector.load %arg6[%c0_61, %c0_62, %c0_63, %c0_64] : memref<1x8x16x128xf32, #tpu.memory_space<vmem>>, vector<1x7x16x128xf32>
    %60 = vector.shape_cast %59 : vector<1x7x16x128xf32> to vector<7x16x128xf32>
    %61 = arith.addf %60, %58 : vector<7x16x128xf32>
    %c0_65 = arith.constant 0 : index
    %c0_66 = arith.constant 0 : index
    %c0_67 = arith.constant 0 : index
    %c0_68 = arith.constant 0 : index
    %62 = vector.load %arg6[%c0_65, %c0_66, %c0_67, %c0_68] : memref<1x8x16x128xf32, #tpu.memory_space<vmem>>, vector<1x7x16x128xf32>
    %63 = vector.shape_cast %62 : vector<1x7x16x128xf32> to vector<7x16x128xf32>
    %64 = vector.shape_cast %61 : vector<7x16x128xf32> to vector<1x7x16x128xf32>
    tpu.vector_store %arg6[%c0_65, %c0_66, %c0_67, %c0_68], %64 {strides = array<i32>} : memref<1x8x16x128xf32, #tpu.memory_space<vmem>>, vector<1x7x16x128xf32>,
    %c0_69 = arith.constant 0 : index
    %c0_70 = arith.constant 0 : index
    %c1_71 = arith.constant 1 : index
    %c0_72 = arith.constant 0 : index
    %65 = vector.load %arg3[%c0_69, %c0_70, %c1_71, %c0_72] : memref<1x2x17x128xbf16, #tpu.memory_space<vmem>>, vector<1x1x16x128xbf16>
    %66 = vector.shape_cast %65 : vector<1x1x16x128xbf16> to vector<1x16x128xbf16>
    %67 = vector.shape_cast %66 : vector<1x16x128xbf16> to vector<16x128xbf16>
    %cst_73 = arith.constant dense<0.000000e+00> : vector<16x128xf32>
    %68 = tpu.matmul %67, %53, %cst_73 {dimension_numbers = #tpu.dot_dimension_numbers<[1], [0], [0], [1], [0, 0, 1, 1], [], []>} : vector<16x128xbf16>, vector<128x128xbf16>, vector<16x128xf32> -> vector<16x128xf32>
    %69 = vector.shape_cast %68 : vector<16x128xf32> to vector<1x16x128xf32>
    %c0_74 = arith.constant 0 : index
    %c7_75 = arith.constant 7 : index
    %c0_76 = arith.constant 0 : index
    %c0_77 = arith.constant 0 : index
    %70 = vector.load %arg6[%c0_74, %c7_75, %c0_76, %c0_77] : memref<1x8x16x128xf32, #tpu.memory_space<vmem>>, vector<1x1x16x128xf32>
    %71 = vector.shape_cast %70 : vector<1x1x16x128xf32> to vector<1x16x128xf32>
    %72 = arith.addf %71, %69 : vector<1x16x128xf32>
    %c0_78 = arith.constant 0 : index
    %c7_79 = arith.constant 7 : index
    %c0_80 = arith.constant 0 : index
    %c0_81 = arith.constant 0 : index
    %73 = vector.load %arg6[%c0_78, %c7_79, %c0_80, %c0_81] : memref<1x8x16x128xf32, #tpu.memory_space<vmem>>, vector<1x1x16x128xf32>
    %74 = vector.shape_cast %73 : vector<1x1x16x128xf32> to vector<1x16x128xf32>
    %75 = vector.shape_cast %72 : vector<1x16x128xf32> to vector<1x1x16x128xf32>
    tpu.vector_store %arg6[%c0_78, %c7_79, %c0_80, %c0_81], %75 {strides = array<i32>} : memref<1x8x16x128xf32, #tpu.memory_space<vmem>>, vector<1x1x16x128xf32>,
    return
  }
  func.func @transform_0(%arg0: i32, %arg1: i32) -> (i32, i32, i32, i32) {
    %c0_i32 = arith.constant 0 : i32
    %c0_i32_0 = arith.constant 0 : i32
    %c0_i32_1 = arith.constant 0 : i32
    return %arg1, %arg0, %c0_i32, %c0_i32_0 : i32, i32, i32, i32
  }
  func.func @transform_1(%arg0: i32, %arg1: i32) -> (i32, i32, i32, i32) {
    %c1_i32 = arith.constant 1 : i32
    %0 = arith.addi %arg0, %c1_i32 : i32
    %c4_i32 = arith.constant 4 : i32
    %1 = arith.muli %0, %c4_i32 : i32
    %c0_i32 = arith.constant 0 : i32
    %c0_i32_0 = arith.constant 0 : i32
    %c0_i32_1 = arith.constant 0 : i32
    return %arg1, %1, %c0_i32, %c0_i32_0 : i32, i32, i32, i32
  }
  func.func @transform_2(%arg0: i32, %arg1: i32) -> (i32, i32, i32) {
    %c0_i32 = arith.constant 0 : i32
    %c0_i32_0 = arith.constant 0 : i32
    %c0_i32_1 = arith.constant 0 : i32
    %c0_i32_2 = arith.constant 0 : i32
    return %c0_i32, %c0_i32_0, %c0_i32_1 : i32, i32, i32
  }
  func.func @transform_3(%arg0: i32, %arg1: i32) -> (i32, i32) {
    %c0_i32 = arith.constant 0 : i32
    %c0_i32_0 = arith.constant 0 : i32
    %c0_i32_1 = arith.constant 0 : i32
    return %c0_i32, %c0_i32_0 : i32, i32
  }
  func.func @transform_4(%arg0: i32, %arg1: i32) -> (i32, i32, i32, i32) {
    %c0_i32 = arith.constant 0 : i32
    %c0_i32_0 = arith.constant 0 : i32
    %c0_i32_1 = arith.constant 0 : i32
    return %arg1, %arg0, %c0_i32, %c0_i32_0 : i32, i32, i32, i32
  }
}

</mosaic_0001>

<llo_original>
// kernel: tile.8
$region0: #{tile.8}
  #allocation0 [shape = 's32[1]{0}', space=sflag, size = 0x4, scoped, tag = 'scoped memory for tile.8']
  %s0 = inlined_call_operand.vmem [shape: f32[4], index: 0, kind: input, shape index: {}]
  %s1 = inlined_call_operand.vmem [shape: f32[4,4], index: 1, kind: output, shape index: {}]
  // Predicated region
  $region2: #{tile.8} parent=0 // pred_check
    _
  $region3: #{tile.8} parent=0 // pred_check_branch
    %3 = sbr.rel (0) target = $region5
  $region4: #{tile.8} parent=0 // pred_region
    _
  $region5: #{tile.8} parent=0 // pred_fallthru
    _
  %v4 = vld [vmem:[%s0] ss:$0 sm:$0xff]
  %5 = vst [vmem:[%s1] sm:$0xf] %v4

// kernel: tile.9
$region0: #{tile.9}
  %s0 = inlined_call_operand.vmem [shape: f32[4,4], index: 0, kind: input, shape index: {}]
  %s1 = inlined_call_operand.vmem [shape: f32[16], index: 1, kind: output, shape index: {}]
  $region1: #{tile.9} parent=0
    #allocation0 [shape = 'u8[4096]{0}', space=vmem, size = 0x1000, scoped, tag = 'scoped mem for output reshape']
    #allocation1 [shape = 'u8[4096]{0}', space=vmem, size = 0x1000, scoped, tag = 'scoped mem for input reshape']
    %s3 = ssub.s32 16, 1
    %v4 = vld [vmem:[%s0] sm:%s3]
    %5 = vst [vmem:[#allocation1] sm:%s3] %v4
    %v6 = vld [vmem:[#allocation1] sm:$0x1]
    %vm7 = vcmask 31744
    %8 = vst.msk [vmem:[#allocation0] sm:$0x1] %vm7, %v6
    %s9 = scalar_lea.vmem [#allocation1], 3
    %v10 = vld [vmem:[%s9] sm:$0x1]
    %11 = vrot.lane.b32.xlu0 %v10, 12
    %v12 = vpop.permute.xlu0 %11
    %vm13 = vcmask 130144
    %14 = vst.msk [vmem:[#allocation0] sm:$0x1] %vm13, %v12
    %s15 = scalar_lea.vmem [#allocation1], 2
    %v16 = vld [vmem:[%s15] sm:$0x1]
    %17 = vrot.lane.b32.xlu0 %v16, 8
    %v18 = vpop.permute.xlu0 %17
    %vm19 = vcmask 97344
    %20 = vst.msk [vmem:[#allocation0] sm:$0x1] %vm19, %v18
    %s21 = scalar_lea.vmem [#allocation1], 1
    %v22 = vld [vmem:[%s21] sm:$0x1]
    %23 = vrot.lane.b32.xlu0 %v22, 4
    %v24 = vpop.permute.xlu0 %23
    %vm25 = vcmask 64544
    %26 = vst.msk [vmem:[#allocation0] sm:$0x1] %vm25, %v24
    %s28 = ssub.s32 2, 1
    %v29 = vld [vmem:[#allocation0] sm:%s28]
    %s31 = ssub.s32 2, 1
    %32 = vst [vmem:[%s1] sm:%s31] %v29

// kernel: upsample_forward.1
$region0: #{upsample_forward.1}
  #allocation0 [shape = 'u32[]', space=smem, size = 0x4, offset = 0x4, fixed_abs, tag = 'smem constant byte address 0x4 - core index']
  #allocation1 [shape = 'u32[72,128]{1,0:T(1,128)}', space=vmem, size = 0x9000, scoped, tag = 'internal scratch']
  %s0 = inlined_call_operand.vmem [shape: bf16[2,18,17,128], index: 0, kind: input, shape index: {}, may-alias: {0,1}]
  %s1 = inlined_call_operand.vmem [shape: bf16[2,18,17,128], index: 1, kind: input, shape index: {}, may-alias: {0,1}]
  %s2 = inlined_call_operand.vmem [shape: bf16[4,128,128], index: 2, kind: input, shape index: {}]
  %s3 = inlined_call_operand.vmem [shape: f32[1,128], index: 3, kind: input, shape index: {}]
  %s4 = inlined_call_operand.vmem [shape: f32[2,16,16,128], index: 4, kind: output, shape index: {}]
  %s5 = sld [smem:[#allocation0]]
  $region49: #{upsample_forward.1} parent=0
    _
  %s7 = ssub.s32 1, %s5
  %s8 = scalar_select 0, %s7, %s5
  loop: start=0, step=1, limit=6
  $region2: #{upsample_forward.1} parent=0 // loop_pre_header
    _
  $region3: #{upsample_forward.1} parent=0 // loop_header
    %s10 = sphi 0, %s14
    %p11 = scmp.ge.s32.totalorder %s10, 6
    %s17 = sphi 0, %s29
    %s18 = sphi 0, %s25
    %s19 = sphi 0, %s17
    %s20 = sphi 0, %s18
    %s21 = sphi 0, %s19
    %s22 = sphi 0, %s20
    %s34 = sphi 0, %s36
    %s37 = sphi 0, %s34
    %s38 = sphi 0, %s37
    %s54 = sphi 0, %s38
    %s66 = sphi 0, %s68
    %s69 = sphi 0, %s66
    %s70 = sphi 0, %s69
    %s86 = sphi 0, %s70
    %s90 = sphi 0, %s90
    %s92 = sphi 0, %s90
    %s93 = sphi 0, %s92
    %s107 = sphi 0, %s93
    %s111 = sphi 0, %s111
    %s113 = sphi 0, %s111
    %s114 = sphi 0, %s113
    %s128 = sphi 0, %s114
    %s136 = sphi 0, %s138
    %s139 = sphi 0, %s136
    %s140 = sphi 0, %s139
    %s156 = sphi 0, %s140
  $region4: #{upsample_forward.1} parent=0 // loop_header_branch
    %13 = sbr.rel (%p11) target = $region8
  $region5: #{upsample_forward.1} parent=0 // loop_body
    %s15 = ssub.s32 %s10, 1
    %s16 = ssub.s32 %s10, 2
    %s23 = sadd.s32 1, %s18
    %p24 = scmp.ge.s32.totalorder %s23, 2
    %s25 = scalar_select %p24, 0, %s23
    %s26 = sadd.s32 1, %s17
    %s27 = scalar_select %p24, %s26, %s17
    %p28 = scmp.ge.s32.totalorder %s27, 2
    %s29 = scalar_select %p28, 0, %s27
    %s30 = ssub.s32 %s18, %s25
    %s31 = ssub.s32 %s17, %s29
    %s32 = sor.u32 %s30, %s31
    %p33 = scmp.eq.s32.totalorder %s32, 0
    %s35 = sadd.s32 %s34, 1
    %s36 = scalar_select %p33, %s34, %s35
    %p39 = pneg %p33
    %p40 = scmp.eq.s32.totalorder %s10, 3
    %p41 = por %p39, %p40
    %p42 = scmp.ne.s32.totalorder %s34, %s37
    %p43 = scmp.eq.s32.totalorder %s10, 0
    %p44 = por %p42, %p43
    %p45 = scmp.ne.s32.totalorder %s34, %s37
    %p46 = scmp.eq.s32.totalorder %s15, 3
    %p47 = por %p45, %p46
    %p48 = scmp.ne.s32.totalorder %s37, %s38
    %p49 = scmp.eq.s32.totalorder %s15, 0
    %p50 = por %p48, %p49
    %p51 = scmp.ne.s32.totalorder %s37, %s38
    %p52 = scmp.eq.s32.totalorder %s16, 3
    %p53 = por %p51, %p52
    %p55 = scmp.ne.s32.totalorder %s38, %s54
    %p56 = scmp.eq.s32.totalorder %s16, 0
    %p57 = por %p55, %p56
    %s58 = sadd.s32 %s17, 1
    %s59 = smul.u32 %s58, 4
    %s60 = sadd.s32 %s29, 1
    %s61 = smul.u32 %s60, 4
    %s62 = ssub.s32 %s18, %s25
    %s63 = ssub.s32 %s59, %s61
    %s64 = sor.u32 %s62, %s63
    %p65 = scmp.eq.s32.totalorder %s64, 0
    %s67 = sadd.s32 %s66, 1
    %s68 = scalar_select %p65, %s66, %s67
    %p71 = pneg %p65
    %p72 = scmp.eq.s32.totalorder %s10, 3
    %p73 = por %p71, %p72
    %p74 = scmp.ne.s32.totalorder %s66, %s69
    %p75 = scmp.eq.s32.totalorder %s10, 0
    %p76 = por %p74, %p75
    %p77 = scmp.ne.s32.totalorder %s66, %s69
    %p78 = scmp.eq.s32.totalorder %s15, 3
    %p79 = por %p77, %p78
    %p80 = scmp.ne.s32.totalorder %s69, %s70
    %p81 = scmp.eq.s32.totalorder %s15, 0
    %p82 = por %p80, %p81
    %p83 = scmp.ne.s32.totalorder %s69, %s70
    %p84 = scmp.eq.s32.totalorder %s16, 3
    %p85 = por %p83, %p84
    %p87 = scmp.ne.s32.totalorder %s70, %s86
    %p88 = scmp.eq.s32.totalorder %s16, 0
    %p89 = por %p87, %p88
    %s91 = sadd.s32 %s90, 1
    %p94 = scmp.eq.s32.totalorder %s10, 3
    %p95 = scmp.ne.s32.totalorder %s90, %s92
    %p96 = scmp.eq.s32.totalorder %s10, 0
    %p97 = por %p95, %p96
    %p98 = scmp.ne.s32.totalorder %s90, %s92
    %p99 = scmp.eq.s32.totalorder %s15, 3
    %p100 = por %p98, %p99
    %p101 = scmp.ne.s32.totalorder %s92, %s93
    %p102 = scmp.eq.s32.totalorder %s15, 0
    %p103 = por %p101, %p102
    %p104 = scmp.ne.s32.totalorder %s92, %s93
    %p105 = scmp.eq.s32.totalorder %s16, 3
    %p106 = por %p104, %p105
    %p108 = scmp.ne.s32.totalorder %s93, %s107
    %p109 = scmp.eq.s32.totalorder %s16, 0
    %p110 = por %p108, %p109
    %s112 = sadd.s32 %s111, 1
    %p115 = scmp.eq.s32.totalorder %s10, 3
    %p116 = scmp.ne.s32.totalorder %s111, %s113
    %p117 = scmp.eq.s32.totalorder %s10, 0
    %p118 = por %p116, %p117
    %p119 = scmp.ne.s32.totalorder %s111, %s113
    %p120 = scmp.eq.s32.totalorder %s15, 3
    %p121 = por %p119, %p120
    %p122 = scmp.ne.s32.totalorder %s113, %s114
    %p123 = scmp.eq.s32.totalorder %s15, 0
    %p124 = por %p122, %p123
    %p125 = scmp.ne.s32.totalorder %s113, %s114
    %p126 = scmp.eq.s32.totalorder %s16, 3
    %p127 = por %p125, %p126
    %p129 = scmp.ne.s32.totalorder %s114, %s128
    %p130 = scmp.eq.s32.totalorder %s16, 0
    %p131 = por %p129, %p130
    %s132 = ssub.s32 %s18, %s25
    %s133 = ssub.s32 %s17, %s29
    %s134 = sor.u32 %s132, %s133
    %p135 = scmp.eq.s32.totalorder %s134, 0
    %s137 = sadd.s32 %s136, 1
    %s138 = scalar_select %p135, %s136, %s137
    %p141 = pneg %p135
    %p142 = scmp.eq.s32.totalorder %s10, 3
    %p143 = por %p141, %p142
    %p144 = scmp.ne.s32.totalorder %s136, %s139
    %p145 = scmp.eq.s32.totalorder %s10, 0
    %p146 = por %p144, %p145
    %p147 = scmp.ne.s32.totalorder %s136, %s139
    %p148 = scmp.eq.s32.totalorder %s15, 3
    %p149 = por %p147, %p148
    %p150 = scmp.ne.s32.totalorder %s139, %s140
    %p151 = scmp.eq.s32.totalorder %s15, 0
    %p152 = por %p150, %p151
    %p153 = scmp.ne.s32.totalorder %s139, %s140
    %p154 = scmp.eq.s32.totalorder %s16, 3
    %p155 = por %p153, %p154
    %p157 = scmp.ne.s32.totalorder %s140, %s156
    %p158 = scmp.eq.s32.totalorder %s16, 0
    %p159 = por %p157, %p158
    %p160 = scmp.le.s32.totalorder 1, %s10
    %p161 = scmp.lt.s32.totalorder %s10, 5
    %p162 = pnand %p160, %p161
    %p163 = pneg %p162
    // Predicated region
    $region9: #{upsample_forward.1} parent=5 // pred_check
      _
    $region10: #{upsample_forward.1} parent=5 // pred_check_branch
      %165 = sbr.rel (%p162) target = $region12
    $region11: #{upsample_forward.1} parent=5 // pred_region
      %s166 = ssub.s32 %s10, 1
      // Predicated region
      $region13: #{upsample_forward.1} parent=11 // pred_check
        %p167 = pneg %p103
      $region14: #{upsample_forward.1} parent=11 // pred_check_branch
        %169 = sbr.rel (%p167) target = $region16
      $region15: #{upsample_forward.1} parent=11 // pred_region
        _
      $region16: #{upsample_forward.1} parent=11 // pred_fallthru
        _
      // Predicated region
      $region17: #{upsample_forward.1} parent=11 // pred_check
        %p170 = pneg %p124
      $region18: #{upsample_forward.1} parent=11 // pred_check_branch
        %172 = sbr.rel (%p170) target = $region20
      $region19: #{upsample_forward.1} parent=11 // pred_region
        _
      $region20: #{upsample_forward.1} parent=11 // pred_fallthru
        _
    $region12: #{upsample_forward.1} parent=5 // pred_fallthru
      _
    %p173 = scmp.lt.s32.totalorder %s10, 4
    // Predicated region
    $region21: #{upsample_forward.1} parent=5 // pred_check
      %p174 = pneg %p173
    $region22: #{upsample_forward.1} parent=5 // pred_check_branch
      %176 = sbr.rel (%p174) target = $region24
    $region23: #{upsample_forward.1} parent=5 // pred_region
      // Predicated region
      $region25: #{upsample_forward.1} parent=23 // pred_check
        %p177 = pneg %p44
      $region26: #{upsample_forward.1} parent=23 // pred_check_branch
        %179 = sbr.rel (%p177) target = $region28
      $region27: #{upsample_forward.1} parent=23 // pred_region
        %s180 = smul.u32 8, %s17
        %s181 = ssub.s32 18, %s180
        %p182 = scmp.lt.s32.totalorder %s181, 8
        %s183 = scalar_select %p182, %s181, 8
        %s184 = smul.u32 4, %s183
        %s185 = smul.u32 %s184, 3
        %p186 = scmp.lt.s32.totalorder %s18, 1
        %s187 = scalar_select %p186, %s18, 1
        %p188 = scmp.lt.s32.totalorder %s180, 17
        %s189 = scalar_select %p188, %s180, 17
        %s190 = smul.addr %s189, 3
        %s191 = smul.addr %s187, 54
        %s192 = sadd.s32 %s190, %s191
        %s193 = smul.addr %s192, 4
        %s194 = scalar_lea.vmem %s0, %s193
        %s195 = smul.u32 8, %s17
        %s196 = ssub.s32 18, %s195
        %p197 = scmp.lt.s32.totalorder %s196, 8
        %s198 = scalar_select %p197, %s196, 8
        %s199 = smul.u32 4, %s198
        %s200 = smul.u32 %s199, 3
      $region28: #{upsample_forward.1} parent=23 // pred_fallthru
        _
      // Predicated region
      $region29: #{upsample_forward.1} parent=23 // pred_check
        %p201 = pneg %p76
      $region30: #{upsample_forward.1} parent=23 // pred_check_branch
        %203 = sbr.rel (%p201) target = $region32
      $region31: #{upsample_forward.1} parent=23 // pred_region
        %s204 = sadd.s32 %s17, 1
        %s205 = smul.u32 %s204, 4
        %s206 = smul.u32 2, %s205
        %p207 = scmp.lt.s32.totalorder %s18, 1
        %s208 = scalar_select %p207, %s18, 1
        %p209 = scmp.lt.s32.totalorder %s206, 17
        %s210 = scalar_select %p209, %s206, 17
        %s211 = smul.addr %s210, 3
        %s212 = smul.addr %s208, 54
        %s213 = sadd.s32 %s211, %s212
        %s214 = smul.addr %s213, 4
        %s215 = scalar_lea.vmem %s1, %s214
        %s216 = sadd.s32 %s17, 1
        %s217 = smul.u32 %s216, 4
        %s218 = smul.u32 2, %s217
      $region32: #{upsample_forward.1} parent=23 // pred_fallthru
        _
    $region24: #{upsample_forward.1} parent=5 // pred_fallthru
      _
    %p219 = scmp.le.s32.totalorder 1, %s10
    %p220 = scmp.lt.s32.totalorder %s10, 5
    %p221 = pnand %p219, %p220
    %p222 = pneg %p221
    // Predicated region
    $region33: #{upsample_forward.1} parent=5 // pred_check
      _
    $region34: #{upsample_forward.1} parent=5 // pred_check_branch
      %224 = sbr.rel (%p221) target = $region36
    $region35: #{upsample_forward.1} parent=5 // pred_region
      %s225 = ssub.s32 %s10, 1
      %s226 = smul.u32 8, %s19
      %s227 = ssub.s32 18, %s226
      %p228 = scmp.lt.s32.totalorder %s227, 8
      %s229 = scalar_select %p228, %s227, 8
      %s230 = smul.u32 4, %s229
      %s231 = smul.u32 %s230, 3
      %p232 = scmp.lt.s32.totalorder %s20, 1
      %s233 = scalar_select %p232, %s20, 1
      %p234 = scmp.lt.s32.totalorder %s226, 17
      %s235 = scalar_select %p234, %s226, 17
      %s236 = smul.addr %s235, 3
      %s237 = smul.addr %s233, 54
      %s238 = sadd.s32 %s236, %s237
      %s239 = smul.addr %s238, 4
      %s240 = scalar_lea.vmem %s0, %s239
      %p241 = pneg %p50
      %p242 = pneg %p47
      %s243 = sadd.s32 %s19, 1
      %s244 = smul.u32 %s243, 4
      %s245 = smul.u32 2, %s244
      %p246 = scmp.lt.s32.totalorder %s20, 1
      %s247 = scalar_select %p246, %s20, 1
      %p248 = scmp.lt.s32.totalorder %s245, 17
      %s249 = scalar_select %p248, %s245, 17
      %s250 = smul.addr %s249, 3
      %s251 = smul.addr %s247, 54
      %s252 = sadd.s32 %s250, %s251
      %s253 = smul.addr %s252, 4
      %s254 = scalar_lea.vmem %s1, %s253
      %p255 = pneg %p82
      %p256 = pneg %p79
      %p257 = pneg %p103
      %p258 = pneg %p100
      %p259 = pneg %p124
      %p260 = pneg %p121
      %p261 = pneg %p152
      %p262 = pneg %p149
      %s263 = smul.u32 8, %s19
      %p264 = scmp.lt.s32.totalorder %s20, 1
      %s265 = scalar_select %p264, %s20, 1
      %p266 = scmp.lt.s32.totalorder %s263, 15
      %s267 = scalar_select %p266, %s263, 15
      %s268 = smul.addr %s267, 2
      %s269 = smul.addr %s265, 32
      %s270 = sadd.s32 %s268, %s269
      %s271 = smul.addr %s270, 8
      %s272 = scalar_lea.vmem %s4, %s271
      %s273 = smul.u32 8, %s19
      %s274 = ssub.s32 18, %s273
      %p275 = scmp.lt.s32.totalorder %s274, 8
      %s276 = scalar_select %p275, %s274, 8
      %s277 = smul.u32 4, %s276
      %s278 = smul.u32 %s277, 3
      %p279 = scmp.lt.s32.totalorder %s20, 1
      %s280 = scalar_select %p279, %s20, 1
      %p281 = scmp.lt.s32.totalorder %s273, 17
      %s282 = scalar_select %p281, %s273, 17
      %s283 = smul.addr %s282, 3
      %s284 = smul.addr %s280, 54
      %s285 = sadd.s32 %s283, %s284
      %s286 = smul.addr %s285, 4
      %s287 = scalar_lea.vmem %s0, %s286
      %s288 = smul.u32 8, %s19
      %s289 = ssub.s32 18, %s288
      %p290 = scmp.lt.s32.totalorder %s289, 8
      %s291 = scalar_select %p290, %s289, 8
      %s292 = smul.u32 4, %s291
      %s293 = smul.u32 %s292, 3
      %s294 = sadd.s32 %s19, 1
      %s295 = smul.u32 %s294, 4
      %s296 = smul.u32 2, %s295
      %p297 = scmp.lt.s32.totalorder %s20, 1
      %s298 = scalar_select %p297, %s20, 1
      %p299 = scmp.lt.s32.totalorder %s296, 17
      %s300 = scalar_select %p299, %s296, 17
      %s301 = smul.addr %s300, 3
      %s302 = smul.addr %s298, 54
      %s303 = sadd.s32 %s301, %s302
      %s304 = smul.addr %s303, 4
      %s305 = scalar_lea.vmem %s1, %s304
      %s306 = sadd.s32 %s19, 1
      %s307 = smul.u32 %s306, 4
      %s308 = smul.u32 2, %s307
      %s309 = smul.u32 8, %s19
      %p310 = scmp.lt.s32.totalorder %s20, 1
      %s311 = scalar_select %p310, %s20, 1
      %p312 = scmp.lt.s32.totalorder %s309, 15
      %s313 = scalar_select %p312, %s309, 15
      %s314 = smul.addr %s313, 2
      %s315 = smul.addr %s311, 32
      %s316 = sadd.s32 %s314, %s315
      %s317 = smul.addr %s316, 8
      %s318 = scalar_lea.vmem %s4, %s317
      %s319 = smul.u32 8, %s19
      %v320 = vld [vmem:[%s3] sm:$0x1]
      %v321 = vld [vmem:[%s2] sm:$0xf]
      %v322 = vld [vmem:[%s2 + $0x4] sm:$0xf]
      %v323 = vld [vmem:[%s2 + $0x8] sm:$0xf]
      %v324 = vld [vmem:[%s2 + $0xc] sm:$0xf]
      %v325 = vld [vmem:[%s2 + $0x10] sm:$0xf]
      %v326 = vld [vmem:[%s2 + $0x14] sm:$0xf]
      %v327 = vld [vmem:[%s2 + $0x18] sm:$0xf]
      %v328 = vld [vmem:[%s2 + $0x1c] sm:$0xf]
      %v329 = vld [vmem:[%s2 + $0x20] sm:$0xf]
      %v330 = vld [vmem:[%s2 + $0x24] sm:$0xf]
      %v331 = vld [vmem:[%s2 + $0x28] sm:$0xf]
      %v332 = vld [vmem:[%s2 + $0x2c] sm:$0xf]
      %v333 = vld [vmem:[%s2 + $0x30] sm:$0xf]
      %v334 = vld [vmem:[%s2 + $0x34] sm:$0xf]
      %v335 = vld [vmem:[%s2 + $0x38] sm:$0xf]
      %v336 = vld [vmem:[%s2 + $0x3c] sm:$0xf]
      %v337 = vld [vmem:[%s287] sm:$0xf]
      %v338 = vld [vmem:[%s287 + $0x4] sm:$0xf]
      %v339 = vld [vmem:[%s287 + $0xc] sm:$0xf]
      %v340 = vld [vmem:[%s287 + $0x10] sm:$0xf]
      %v341 = vld [vmem:[%s287 + $0x18] sm:$0xf]
      %v342 = vld [vmem:[%s287 + $0x1c] sm:$0xf]
      %v343 = vld [vmem:[%s287 + $0x24] sm:$0xf]
      %v344 = vld [vmem:[%s287 + $0x28] sm:$0xf]
      %v345 = vld [vmem:[%s287 + $0x30] sm:$0xf]
      %v346 = vld [vmem:[%s287 + $0x34] sm:$0xf]
      %v347 = vld [vmem:[%s287 + $0x3c] sm:$0xf]
      %v348 = vld [vmem:[%s287 + $0x40] sm:$0xf]
      %v349 = vld [vmem:[%s287 + $0x48] sm:$0xf]
      %v350 = vld [vmem:[%s287 + $0x4c] sm:$0xf]
      %v351 = vld [vmem:[%s287 + $0x54] sm:$0xf]
      %v352 = vld [vmem:[%s287 + $0x58] sm:$0xf]
      %v369 = vunpack.c.l.b16 %v337
      %v370 = vunpack.c.l.b16 %v338
      %v371 = vunpack.c.l.b16 %v339
      %v372 = vunpack.c.l.b16 %v340
      %v373 = vunpack.c.l.b16 %v341
      %v374 = vunpack.c.l.b16 %v342
      %v375 = vunpack.c.l.b16 %v343
      %v376 = vunpack.c.l.b16 %v344
      %v377 = vunpack.c.l.b16 %v345
      %v378 = vunpack.c.l.b16 %v346
      %v379 = vunpack.c.l.b16 %v347
      %v380 = vunpack.c.l.b16 %v348
      %v381 = vunpack.c.l.b16 %v349
      %v382 = vunpack.c.l.b16 %v350
      %v383 = vunpack.c.l.b16 %v351
      %v384 = vunpack.c.l.b16 %v352
      %v385 = vpack.c.b16 %v370, %v369
      %v386 = vpack.c.b16 %v372, %v371
      %v387 = vpack.c.b16 %v374, %v373
      %v388 = vpack.c.b16 %v376, %v375
      %v389 = vpack.c.b16 %v378, %v377
      %v390 = vpack.c.b16 %v380, %v379
      %v391 = vpack.c.b16 %v382, %v381
      %v392 = vpack.c.b16 %v384, %v383
      %v417 = vunpack.c.l.b16 %v321
      %v418 = vunpack.c.l.b16 %v322
      %v419 = vunpack.c.l.b16 %v323
      %v420 = vunpack.c.l.b16 %v324
      %v421 = vunpack.c.l.b16 %v325
      %v422 = vunpack.c.l.b16 %v326
      %v423 = vunpack.c.l.b16 %v327
      %v424 = vunpack.c.l.b16 %v328
      %v425 = vunpack.c.l.b16 %v329
      %v426 = vunpack.c.l.b16 %v330
      %v427 = vunpack.c.l.b16 %v331
      %v428 = vunpack.c.l.b16 %v332
      %v429 = vunpack.c.l.b16 %v333
      %v430 = vunpack.c.l.b16 %v334
      %v431 = vunpack.c.l.b16 %v335
      %v432 = vunpack.c.l.b16 %v336
      %v433 = vpack.c.b16 %v418, %v417
      %v434 = vpack.c.b16 %v420, %v419
      %v435 = vpack.c.b16 %v422, %v421
      %v436 = vpack.c.b16 %v424, %v423
      %v437 = vpack.c.b16 %v426, %v425
      %v438 = vpack.c.b16 %v428, %v427
      %v439 = vpack.c.b16 %v430, %v429
      %v440 = vpack.c.b16 %v432, %v431
      %449 = vmatpush.bf16.msra.mxu0 %v440
      %450 = vmatpush.bf16.msra.mxu0 %v439
      %451 = vmatpush.bf16.msra.mxu0 %v438
      %452 = vmatpush.bf16.msra.mxu0 %v437
      %453 = vmatpush.bf16.msra.mxu0 %v436
      %454 = vmatpush.bf16.msra.mxu0 %v435
      %455 = vmatpush.bf16.msra.mxu0 %v434
      %456 = vmatpush.bf16.msra.mxu0 %v433
      %457 = vmatmul.bf16.gmra.mxu0 %v385
      %v458 = vpop.f32.mrf.mxu0
      %v459 = vadd.f32 0.0, %v458
      %v460 = vpop.f32.mrf.mxu0
      %v461 = vadd.f32 0.0, %v460
      %462 = vmatmul.bf16.gmra.mxu0 %v386
      %v463 = vpop.f32.mrf.mxu0
      %v464 = vadd.f32 0.0, %v463
      %v465 = vpop.f32.mrf.mxu0
      %v466 = vadd.f32 0.0, %v465
      %467 = vmatmul.bf16.gmra.mxu0 %v387
      %v468 = vpop.f32.mrf.mxu0
      %v469 = vadd.f32 0.0, %v468
      %v470 = vpop.f32.mrf.mxu0
      %v471 = vadd.f32 0.0, %v470
      %472 = vmatmul.bf16.gmra.mxu0 %v388
      %v473 = vpop.f32.mrf.mxu0
      %v474 = vadd.f32 0.0, %v473
      %v475 = vpop.f32.mrf.mxu0
      %v476 = vadd.f32 0.0, %v475
      %477 = vmatmul.bf16.gmra.mxu0 %v389
      %v478 = vpop.f32.mrf.mxu0
      %v479 = vadd.f32 0.0, %v478
      %v480 = vpop.f32.mrf.mxu0
      %v481 = vadd.f32 0.0, %v480
      %482 = vmatmul.bf16.gmra.mxu0 %v390
      %v483 = vpop.f32.mrf.mxu0
      %v484 = vadd.f32 0.0, %v483
      %v485 = vpop.f32.mrf.mxu0
      %v486 = vadd.f32 0.0, %v485
      %487 = vmatmul.bf16.gmra.mxu0 %v391
      %v488 = vpop.f32.mrf.mxu0
      %v489 = vadd.f32 0.0, %v488
      %v490 = vpop.f32.mrf.mxu0
      %v491 = vadd.f32 0.0, %v490
      %492 = vmatmul.bf16.gmra.mxu0 %v392
      %v493 = vpop.f32.mrf.mxu0
      %v494 = vadd.f32 0.0, %v493
      %v495 = vpop.f32.mrf.mxu0
      %v496 = vadd.f32 0.0, %v495
      %497 = vdwg.mxu0
      %v499 = vperm.slane %v320, 0
      %v501 = vadd.f32 %v459, %v499
      %v502 = vadd.f32 %v461, %v499
      %v503 = vadd.f32 %v464, %v499
      %v504 = vadd.f32 %v466, %v499
      %v505 = vadd.f32 %v469, %v499
      %v506 = vadd.f32 %v471, %v499
      %v507 = vadd.f32 %v474, %v499
      %v508 = vadd.f32 %v476, %v499
      %v509 = vadd.f32 %v479, %v499
      %v510 = vadd.f32 %v481, %v499
      %v511 = vadd.f32 %v484, %v499
      %v512 = vadd.f32 %v486, %v499
      %v513 = vadd.f32 %v489, %v499
      %v514 = vadd.f32 %v491, %v499
      %v515 = vadd.f32 %v494, %v499
      %v516 = vadd.f32 %v496, %v499
      %517 = vst [vmem:[%s318] sm:$0xff] %v501
      %518 = vst [vmem:[%s318 + $0x8] sm:$0xff] %v502
      %519 = vst [vmem:[%s318 + $0x10] sm:$0xff] %v503
      %520 = vst [vmem:[%s318 + $0x18] sm:$0xff] %v504
      %521 = vst [vmem:[%s318 + $0x20] sm:$0xff] %v505
      %522 = vst [vmem:[%s318 + $0x28] sm:$0xff] %v506
      %523 = vst [vmem:[%s318 + $0x30] sm:$0xff] %v507
      %524 = vst [vmem:[%s318 + $0x38] sm:$0xff] %v508
      %525 = vst [vmem:[%s318 + $0x40] sm:$0xff] %v509
      %526 = vst [vmem:[%s318 + $0x48] sm:$0xff] %v510
      %527 = vst [vmem:[%s318 + $0x50] sm:$0xff] %v511
      %528 = vst [vmem:[%s318 + $0x58] sm:$0xff] %v512
      %529 = vst [vmem:[%s318 + $0x60] sm:$0xff] %v513
      %530 = vst [vmem:[%s318 + $0x68] sm:$0xff] %v514
      %531 = vst [vmem:[%s318 + $0x70] sm:$0xff] %v515
      %532 = vst [vmem:[%s318 + $0x78] sm:$0xff] %v516
      %s533 = scalar_lea.vmem %s2, 64
      %v534 = vld [vmem:[%s533] sm:$0xf]
      %v535 = vld [vmem:[%s533 + $0x4] sm:$0xf]
      %v536 = vld [vmem:[%s533 + $0x8] sm:$0xf]
      %v537 = vld [vmem:[%s533 + $0xc] sm:$0xf]
      %v538 = vld [vmem:[%s533 + $0x10] sm:$0xf]
      %v539 = vld [vmem:[%s533 + $0x14] sm:$0xf]
      %v540 = vld [vmem:[%s533 + $0x18] sm:$0xf]
      %v541 = vld [vmem:[%s533 + $0x1c] sm:$0xf]
      %v542 = vld [vmem:[%s533 + $0x20] sm:$0xf]
      %v543 = vld [vmem:[%s533 + $0x24] sm:$0xf]
      %v544 = vld [vmem:[%s533 + $0x28] sm:$0xf]
      %v545 = vld [vmem:[%s533 + $0x2c] sm:$0xf]
      %v546 = vld [vmem:[%s533 + $0x30] sm:$0xf]
      %v547 = vld [vmem:[%s533 + $0x34] sm:$0xf]
      %v548 = vld [vmem:[%s533 + $0x38] sm:$0xf]
      %v549 = vld [vmem:[%s533 + $0x3c] sm:$0xf]
      %v550 = vld [vmem:[%s287] sm:$0xf]
      %v551 = vld [vmem:[%s287 + $0x4] sm:$0xf]
      %v552 = vld [vmem:[%s287 + $0x8] sm:$0x1]
      %v553 = vld [vmem:[%s287 + $0xc] sm:$0xf]
      %v554 = vld [vmem:[%s287 + $0x10] sm:$0xf]
      %v555 = vld [vmem:[%s287 + $0x14] sm:$0x1]
      %v556 = vld [vmem:[%s287 + $0x18] sm:$0xf]
      %v557 = vld [vmem:[%s287 + $0x1c] sm:$0xf]
      %v558 = vld [vmem:[%s287 + $0x20] sm:$0x1]
      %v559 = vld [vmem:[%s287 + $0x24] sm:$0xf]
      %v560 = vld [vmem:[%s287 + $0x28] sm:$0xf]
      %v561 = vld [vmem:[%s287 + $0x2c] sm:$0x1]
      %v562 = vld [vmem:[%s287 + $0x30] sm:$0xf]
      %v563 = vld [vmem:[%s287 + $0x34] sm:$0xf]
      %v564 = vld [vmem:[%s287 + $0x38] sm:$0x1]
      %v565 = vld [vmem:[%s287 + $0x3c] sm:$0xf]
      %v566 = vld [vmem:[%s287 + $0x40] sm:$0xf]
      %v567 = vld [vmem:[%s287 + $0x44] sm:$0x1]
      %v568 = vld [vmem:[%s287 + $0x48] sm:$0xf]
      %v569 = vld [vmem:[%s287 + $0x4c] sm:$0xf]
      %v570 = vld [vmem:[%s287 + $0x50] sm:$0x1]
      %v571 = vld [vmem:[%s287 + $0x54] sm:$0xf]
      %v572 = vld [vmem:[%s287 + $0x58] sm:$0xf]
      %v573 = vld [vmem:[%s287 + $0x5c] sm:$0x1]
      %vm574 = vsmask.f32 3328
      %vm575 = vsmask.f32 7440
      %vm576 = vmor %vm574, %vm575
      %v578 = vshrl.u32 %v550, 16
      %v580 = vrot.slane %v578, 4
      %v581 = vshll.u32 %v550, 16
      %v583 = vrot.slane %v581, 5
      %v584 = vor.u32 %v580, %v583
      %v585 = vrot.slane %v584, 4
      %v587 = vshll.u32 %v551, 16
      %v589 = vrot.slane %v587, 5
      %v590 = vsel %vm576, %v585, %v589
      %v591 = vshrl.u32 %v551, 16
      %v593 = vrot.slane %v591, 4
      %v594 = vor.u32 %v593, %v589
      %v595 = vrot.slane %v594, 4
      %v597 = vshll.u32 %v552, 16
      %v599 = vrot.slane %v597, 5
      %v600 = vsel %vm576, %v595, %v599
      %v602 = vshrl.u32 %v553, 16
      %v604 = vrot.slane %v602, 4
      %v605 = vshll.u32 %v553, 16
      %v607 = vrot.slane %v605, 5
      %v608 = vor.u32 %v604, %v607
      %v609 = vrot.slane %v608, 4
      %v611 = vshll.u32 %v554, 16
      %v613 = vrot.slane %v611, 5
      %v614 = vsel %vm576, %v609, %v613
      %v615 = vshrl.u32 %v554, 16
      %v617 = vrot.slane %v615, 4
      %v618 = vor.u32 %v617, %v613
      %v619 = vrot.slane %v618, 4
      %v621 = vshll.u32 %v555, 16
      %v623 = vrot.slane %v621, 5
      %v624 = vsel %vm576, %v619, %v623
      %v626 = vshrl.u32 %v556, 16
      %v628 = vrot.slane %v626, 4
      %v629 = vshll.u32 %v556, 16
      %v631 = vrot.slane %v629, 5
      %v632 = vor.u32 %v628, %v631
      %v633 = vrot.slane %v632, 4
      %v635 = vshll.u32 %v557, 16
      %v637 = vrot.slane %v635, 5
      %v638 = vsel %vm576, %v633, %v637
      %v639 = vshrl.u32 %v557, 16
      %v641 = vrot.slane %v639, 4
      %v642 = vor.u32 %v641, %v637
      %v643 = vrot.slane %v642, 4
      %v645 = vshll.u32 %v558, 16
      %v647 = vrot.slane %v645, 5
      %v648 = vsel %vm576, %v643, %v647
      %v650 = vshrl.u32 %v559, 16
      %v652 = vrot.slane %v650, 4
      %v653 = vshll.u32 %v559, 16
      %v655 = vrot.slane %v653, 5
      %v656 = vor.u32 %v652, %v655
      %v657 = vrot.slane %v656, 4
      %v659 = vshll.u32 %v560, 16
      %v661 = vrot.slane %v659, 5
      %v662 = vsel %vm576, %v657, %v661
      %v663 = vshrl.u32 %v560, 16
      %v665 = vrot.slane %v663, 4
      %v666 = vor.u32 %v665, %v661
      %v667 = vrot.slane %v666, 4
      %v669 = vshll.u32 %v561, 16
      %v671 = vrot.slane %v669, 5
      %v672 = vsel %vm576, %v667, %v671
      %v674 = vshrl.u32 %v562, 16
      %v676 = vrot.slane %v674, 4
      %v677 = vshll.u32 %v562, 16
      %v679 = vrot.slane %v677, 5
      %v680 = vor.u32 %v676, %v679
      %v681 = vrot.slane %v680, 4
      %v683 = vshll.u32 %v563, 16
      %v685 = vrot.slane %v683, 5
      %v686 = vsel %vm576, %v681, %v685
      %v687 = vshrl.u32 %v563, 16
      %v689 = vrot.slane %v687, 4
      %v690 = vor.u32 %v689, %v685
      %v691 = vrot.slane %v690, 4
      %v693 = vshll.u32 %v564, 16
      %v695 = vrot.slane %v693, 5
      %v696 = vsel %vm576, %v691, %v695
      %v698 = vshrl.u32 %v565, 16
      %v700 = vrot.slane %v698, 4
      %v701 = vshll.u32 %v565, 16
      %v703 = vrot.slane %v701, 5
      %v704 = vor.u32 %v700, %v703
      %v705 = vrot.slane %v704, 4
      %v707 = vshll.u32 %v566, 16
      %v709 = vrot.slane %v707, 5
      %v710 = vsel %vm576, %v705, %v709
      %v711 = vshrl.u32 %v566, 16
      %v713 = vrot.slane %v711, 4
      %v714 = vor.u32 %v713, %v709
      %v715 = vrot.slane %v714, 4
      %v717 = vshll.u32 %v567, 16
      %v719 = vrot.slane %v717, 5
      %v720 = vsel %vm576, %v715, %v719
      %v722 = vshrl.u32 %v568, 16
      %v724 = vrot.slane %v722, 4
      %v725 = vshll.u32 %v568, 16
      %v727 = vrot.slane %v725, 5
      %v728 = vor.u32 %v724, %v727
      %v729 = vrot.slane %v728, 4
      %v731 = vshll.u32 %v569, 16
      %v733 = vrot.slane %v731, 5
      %v734 = vsel %vm576, %v729, %v733
      %v735 = vshrl.u32 %v569, 16
      %v737 = vrot.slane %v735, 4
      %v738 = vor.u32 %v737, %v733
      %v739 = vrot.slane %v738, 4
      %v741 = vshll.u32 %v570, 16
      %v743 = vrot.slane %v741, 5
      %v744 = vsel %vm576, %v739, %v743
      %v746 = vshrl.u32 %v571, 16
      %v748 = vrot.slane %v746, 4
      %v749 = vshll.u32 %v571, 16
      %v751 = vrot.slane %v749, 5
      %v752 = vor.u32 %v748, %v751
      %v753 = vrot.slane %v752, 4
      %v755 = vshll.u32 %v572, 16
      %v757 = vrot.slane %v755, 5
      %v758 = vsel %vm576, %v753, %v757
      %v759 = vshrl.u32 %v572, 16
      %v761 = vrot.slane %v759, 4
      %v762 = vor.u32 %v761, %v757
      %v763 = vrot.slane %v762, 4
      %v765 = vshll.u32 %v573, 16
      %v767 = vrot.slane %v765, 5
      %v768 = vsel %vm576, %v763, %v767
      %v769 = vunpack.c.l.b16 %v590
      %v770 = vunpack.c.l.b16 %v600
      %v771 = vunpack.c.l.b16 %v614
      %v772 = vunpack.c.l.b16 %v624
      %v773 = vunpack.c.l.b16 %v638
      %v774 = vunpack.c.l.b16 %v648
      %v775 = vunpack.c.l.b16 %v662
      %v776 = vunpack.c.l.b16 %v672
      %v777 = vunpack.c.l.b16 %v686
      %v778 = vunpack.c.l.b16 %v696
      %v779 = vunpack.c.l.b16 %v710
      %v780 = vunpack.c.l.b16 %v720
      %v781 = vunpack.c.l.b16 %v734
      %v782 = vunpack.c.l.b16 %v744
      %v783 = vunpack.c.l.b16 %v758
      %v784 = vunpack.c.l.b16 %v768
      %v785 = vpack.c.b16 %v770, %v769
      %v786 = vpack.c.b16 %v772, %v771
      %v787 = vpack.c.b16 %v774, %v773
      %v788 = vpack.c.b16 %v776, %v775
      %v789 = vpack.c.b16 %v778, %v777
      %v790 = vpack.c.b16 %v780, %v779
      %v791 = vpack.c.b16 %v782, %v781
      %v792 = vpack.c.b16 %v784, %v783
      %v817 = vunpack.c.l.b16 %v534
      %v818 = vunpack.c.l.b16 %v535
      %v819 = vunpack.c.l.b16 %v536
      %v820 = vunpack.c.l.b16 %v537
      %v821 = vunpack.c.l.b16 %v538
      %v822 = vunpack.c.l.b16 %v539
      %v823 = vunpack.c.l.b16 %v540
      %v824 = vunpack.c.l.b16 %v541
      %v825 = vunpack.c.l.b16 %v542
      %v826 = vunpack.c.l.b16 %v543
      %v827 = vunpack.c.l.b16 %v544
      %v828 = vunpack.c.l.b16 %v545
      %v829 = vunpack.c.l.b16 %v546
      %v830 = vunpack.c.l.b16 %v547
      %v831 = vunpack.c.l.b16 %v548
      %v832 = vunpack.c.l.b16 %v549
      %v833 = vpack.c.b16 %v818, %v817
      %v834 = vpack.c.b16 %v820, %v819
      %v835 = vpack.c.b16 %v822, %v821
      %v836 = vpack.c.b16 %v824, %v823
      %v837 = vpack.c.b16 %v826, %v825
      %v838 = vpack.c.b16 %v828, %v827
      %v839 = vpack.c.b16 %v830, %v829
      %v840 = vpack.c.b16 %v832, %v831
      %849 = vmatpush.bf16.msra.mxu0 %v840
      %850 = vmatpush.bf16.msra.mxu0 %v839
      %851 = vmatpush.bf16.msra.mxu0 %v838
      %852 = vmatpush.bf16.msra.mxu0 %v837
      %853 = vmatpush.bf16.msra.mxu0 %v836
      %854 = vmatpush.bf16.msra.mxu0 %v835
      %855 = vmatpush.bf16.msra.mxu0 %v834
      %856 = vmatpush.bf16.msra.mxu0 %v833
      %857 = vmatmul.bf16.gmra.mxu0 %v785
      %v858 = vpop.f32.mrf.mxu0
      %v859 = vadd.f32 0.0, %v858
      %v860 = vpop.f32.mrf.mxu0
      %v861 = vadd.f32 0.0, %v860
      %862 = vmatmul.bf16.gmra.mxu0 %v786
      %v863 = vpop.f32.mrf.mxu0
      %v864 = vadd.f32 0.0, %v863
      %v865 = vpop.f32.mrf.mxu0
      %v866 = vadd.f32 0.0, %v865
      %867 = vmatmul.bf16.gmra.mxu0 %v787
      %v868 = vpop.f32.mrf.mxu0
      %v869 = vadd.f32 0.0, %v868
      %v870 = vpop.f32.mrf.mxu0
      %v871 = vadd.f32 0.0, %v870
      %872 = vmatmul.bf16.gmra.mxu0 %v788
      %v873 = vpop.f32.mrf.mxu0
      %v874 = vadd.f32 0.0, %v873
      %v875 = vpop.f32.mrf.mxu0
      %v876 = vadd.f32 0.0, %v875
      %877 = vmatmul.bf16.gmra.mxu0 %v789
      %v878 = vpop.f32.mrf.mxu0
      %v879 = vadd.f32 0.0, %v878
      %v880 = vpop.f32.mrf.mxu0
      %v881 = vadd.f32 0.0, %v880
      %882 = vmatmul.bf16.gmra.mxu0 %v790
      %v883 = vpop.f32.mrf.mxu0
      %v884 = vadd.f32 0.0, %v883
      %v885 = vpop.f32.mrf.mxu0
      %v886 = vadd.f32 0.0, %v885
      %887 = vmatmul.bf16.gmra.mxu0 %v791
      %v888 = vpop.f32.mrf.mxu0
      %v889 = vadd.f32 0.0, %v888
      %v890 = vpop.f32.mrf.mxu0
      %v891 = vadd.f32 0.0, %v890
      %892 = vmatmul.bf16.gmra.mxu0 %v792
      %v893 = vpop.f32.mrf.mxu0
      %v894 = vadd.f32 0.0, %v893
      %v895 = vpop.f32.mrf.mxu0
      %v896 = vadd.f32 0.0, %v895
      %897 = vdwg.mxu0
      %v898 = vld [vmem:[%s318] sm:$0xff]
      %v899 = vld [vmem:[%s318 + $0x8] sm:$0xff]
      %v900 = vld [vmem:[%s318 + $0x10] sm:$0xff]
      %v901 = vld [vmem:[%s318 + $0x18] sm:$0xff]
      %v902 = vld [vmem:[%s318 + $0x20] sm:$0xff]
      %v903 = vld [vmem:[%s318 + $0x28] sm:$0xff]
      %v904 = vld [vmem:[%s318 + $0x30] sm:$0xff]
      %v905 = vld [vmem:[%s318 + $0x38] sm:$0xff]
      %v906 = vld [vmem:[%s318 + $0x40] sm:$0xff]
      %v907 = vld [vmem:[%s318 + $0x48] sm:$0xff]
      %v908 = vld [vmem:[%s318 + $0x50] sm:$0xff]
      %v909 = vld [vmem:[%s318 + $0x58] sm:$0xff]
      %v910 = vld [vmem:[%s318 + $0x60] sm:$0xff]
      %v911 = vld [vmem:[%s318 + $0x68] sm:$0xff]
      %v912 = vld [vmem:[%s318 + $0x70] sm:$0xff]
      %v913 = vld [vmem:[%s318 + $0x78] sm:$0xff]
      %v914 = vadd.f32 %v898, %v859
      %v915 = vadd.f32 %v899, %v861
      %v916 = vadd.f32 %v900, %v864
      %v917 = vadd.f32 %v901, %v866
      %v918 = vadd.f32 %v902, %v869
      %v919 = vadd.f32 %v903, %v871
      %v920 = vadd.f32 %v904, %v874
      %v921 = vadd.f32 %v905, %v876
      %v922 = vadd.f32 %v906, %v879
      %v923 = vadd.f32 %v907, %v881
      %v924 = vadd.f32 %v908, %v884
      %v925 = vadd.f32 %v909, %v886
      %v926 = vadd.f32 %v910, %v889
      %v927 = vadd.f32 %v911, %v891
      %v928 = vadd.f32 %v912, %v894
      %v929 = vadd.f32 %v913, %v896
      %930 = vst [vmem:[%s318] sm:$0xff] %v914
      %931 = vst [vmem:[%s318 + $0x8] sm:$0xff] %v915
      %932 = vst [vmem:[%s318 + $0x10] sm:$0xff] %v916
      %933 = vst [vmem:[%s318 + $0x18] sm:$0xff] %v917
      %934 = vst [vmem:[%s318 + $0x20] sm:$0xff] %v918
      %935 = vst [vmem:[%s318 + $0x28] sm:$0xff] %v919
      %936 = vst [vmem:[%s318 + $0x30] sm:$0xff] %v920
      %937 = vst [vmem:[%s318 + $0x38] sm:$0xff] %v921
      %938 = vst [vmem:[%s318 + $0x40] sm:$0xff] %v922
      %939 = vst [vmem:[%s318 + $0x48] sm:$0xff] %v923
      %940 = vst [vmem:[%s318 + $0x50] sm:$0xff] %v924
      %941 = vst [vmem:[%s318 + $0x58] sm:$0xff] %v925
      %942 = vst [vmem:[%s318 + $0x60] sm:$0xff] %v926
      %943 = vst [vmem:[%s318 + $0x68] sm:$0xff] %v927
      %944 = vst [vmem:[%s318 + $0x70] sm:$0xff] %v928
      %945 = vst [vmem:[%s318 + $0x78] sm:$0xff] %v929
      %s946 = scalar_lea.vmem %s2, 128
      %v947 = vld [vmem:[%s946] sm:$0xf]
      %v948 = vld [vmem:[%s946 + $0x4] sm:$0xf]
      %v949 = vld [vmem:[%s946 + $0x8] sm:$0xf]
      %v950 = vld [vmem:[%s946 + $0xc] sm:$0xf]
      %v951 = vld [vmem:[%s946 + $0x10] sm:$0xf]
      %v952 = vld [vmem:[%s946 + $0x14] sm:$0xf]
      %v953 = vld [vmem:[%s946 + $0x18] sm:$0xf]
      %v954 = vld [vmem:[%s946 + $0x1c] sm:$0xf]
      %v955 = vld [vmem:[%s946 + $0x20] sm:$0xf]
      %v956 = vld [vmem:[%s946 + $0x24] sm:$0xf]
      %v957 = vld [vmem:[%s946 + $0x28] sm:$0xf]
      %v958 = vld [vmem:[%s946 + $0x2c] sm:$0xf]
      %v959 = vld [vmem:[%s946 + $0x30] sm:$0xf]
      %v960 = vld [vmem:[%s946 + $0x34] sm:$0xf]
      %v961 = vld [vmem:[%s946 + $0x38] sm:$0xf]
      %v962 = vld [vmem:[%s946 + $0x3c] sm:$0xf]
      %s963 = scalar_lea.vmem %s287, 12
      %v964 = vld [vmem:[%s963] sm:$0xf]
      %v965 = vld [vmem:[%s963 + $0x4] sm:$0xf]
      %v966 = vld [vmem:[%s963 + $0xc] sm:$0xf]
      %v967 = vld [vmem:[%s963 + $0x10] sm:$0xf]
      %v968 = vld [vmem:[%s963 + $0x18] sm:$0xf]
      %v969 = vld [vmem:[%s963 + $0x1c] sm:$0xf]
      %v970 = vld [vmem:[%s963 + $0x24] sm:$0xf]
      %v971 = vld [vmem:[%s963 + $0x28] sm:$0xf]
      %v972 = vld [vmem:[%s963 + $0x30] sm:$0xf]
      %v973 = vld [vmem:[%s963 + $0x34] sm:$0xf]
      %v974 = vld [vmem:[%s963 + $0x3c] sm:$0xf]
      %v975 = vld [vmem:[%s963 + $0x40] sm:$0xf]
      %v976 = vld [vmem:[%s963 + $0x48] sm:$0xf]
      %v977 = vld [vmem:[%s963 + $0x4c] sm:$0xf]
      %v992 = vunpack.c.l.b16 %v964
      %v993 = vunpack.c.l.b16 %v965
      %v994 = vunpack.c.l.b16 %v966
      %v995 = vunpack.c.l.b16 %v967
      %v996 = vunpack.c.l.b16 %v968
      %v997 = vunpack.c.l.b16 %v969
      %v998 = vunpack.c.l.b16 %v970
      %v999 = vunpack.c.l.b16 %v971
      %v1000 = vunpack.c.l.b16 %v972
      %v1001 = vunpack.c.l.b16 %v973
      %v1002 = vunpack.c.l.b16 %v974
      %v1003 = vunpack.c.l.b16 %v975
      %v1004 = vunpack.c.l.b16 %v976
      %v1005 = vunpack.c.l.b16 %v977
      %v1006 = vpack.c.b16 %v993, %v992
      %v1007 = vpack.c.b16 %v995, %v994
      %v1008 = vpack.c.b16 %v997, %v996
      %v1009 = vpack.c.b16 %v999, %v998
      %v1010 = vpack.c.b16 %v1001, %v1000
      %v1011 = vpack.c.b16 %v1003, %v1002
      %v1012 = vpack.c.b16 %v1005, %v1004
      %v1036 = vunpack.c.l.b16 %v947
      %v1037 = vunpack.c.l.b16 %v948
      %v1038 = vunpack.c.l.b16 %v949
      %v1039 = vunpack.c.l.b16 %v950
      %v1040 = vunpack.c.l.b16 %v951
      %v1041 = vunpack.c.l.b16 %v952
      %v1042 = vunpack.c.l.b16 %v953
      %v1043 = vunpack.c.l.b16 %v954
      %v1044 = vunpack.c.l.b16 %v955
      %v1045 = vunpack.c.l.b16 %v956
      %v1046 = vunpack.c.l.b16 %v957
      %v1047 = vunpack.c.l.b16 %v958
      %v1048 = vunpack.c.l.b16 %v959
      %v1049 = vunpack.c.l.b16 %v960
      %v1050 = vunpack.c.l.b16 %v961
      %v1051 = vunpack.c.l.b16 %v962
      %v1052 = vpack.c.b16 %v1037, %v1036
      %v1053 = vpack.c.b16 %v1039, %v1038
      %v1054 = vpack.c.b16 %v1041, %v1040
      %v1055 = vpack.c.b16 %v1043, %v1042
      %v1056 = vpack.c.b16 %v1045, %v1044
      %v1057 = vpack.c.b16 %v1047, %v1046
      %v1058 = vpack.c.b16 %v1049, %v1048
      %v1059 = vpack.c.b16 %v1051, %v1050
      %1068 = vmatpush.bf16.msra.mxu0 %v1059
      %1069 = vmatpush.bf16.msra.mxu0 %v1058
      %1070 = vmatpush.bf16.msra.mxu0 %v1057
      %1071 = vmatpush.bf16.msra.mxu0 %v1056
      %1072 = vmatpush.bf16.msra.mxu0 %v1055
      %1073 = vmatpush.bf16.msra.mxu0 %v1054
      %1074 = vmatpush.bf16.msra.mxu0 %v1053
      %1075 = vmatpush.bf16.msra.mxu0 %v1052
      %1076 = vmatmul.bf16.gmra.mxu0 %v1006
      %v1077 = vpop.f32.mrf.mxu0
      %v1078 = vadd.f32 0.0, %v1077
      %v1079 = vpop.f32.mrf.mxu0
      %v1080 = vadd.f32 0.0, %v1079
      %1081 = vmatmul.bf16.gmra.mxu0 %v1007
      %v1082 = vpop.f32.mrf.mxu0
      %v1083 = vadd.f32 0.0, %v1082
      %v1084 = vpop.f32.mrf.mxu0
      %v1085 = vadd.f32 0.0, %v1084
      %1086 = vmatmul.bf16.gmra.mxu0 %v1008
      %v1087 = vpop.f32.mrf.mxu0
      %v1088 = vadd.f32 0.0, %v1087
      %v1089 = vpop.f32.mrf.mxu0
      %v1090 = vadd.f32 0.0, %v1089
      %1091 = vmatmul.bf16.gmra.mxu0 %v1009
      %v1092 = vpop.f32.mrf.mxu0
      %v1093 = vadd.f32 0.0, %v1092
      %v1094 = vpop.f32.mrf.mxu0
      %v1095 = vadd.f32 0.0, %v1094
      %1096 = vmatmul.bf16.gmra.mxu0 %v1010
      %v1097 = vpop.f32.mrf.mxu0
      %v1098 = vadd.f32 0.0, %v1097
      %v1099 = vpop.f32.mrf.mxu0
      %v1100 = vadd.f32 0.0, %v1099
      %1101 = vmatmul.bf16.gmra.mxu0 %v1011
      %v1102 = vpop.f32.mrf.mxu0
      %v1103 = vadd.f32 0.0, %v1102
      %v1104 = vpop.f32.mrf.mxu0
      %v1105 = vadd.f32 0.0, %v1104
      %1106 = vmatmul.bf16.gmra.mxu0 %v1012
      %v1107 = vpop.f32.mrf.mxu0
      %v1108 = vadd.f32 0.0, %v1107
      %v1109 = vpop.f32.mrf.mxu0
      %v1110 = vadd.f32 0.0, %v1109
      %1111 = vdwg.mxu0
      %v1112 = vld [vmem:[%s318] sm:$0xff]
      %v1113 = vld [vmem:[%s318 + $0x8] sm:$0xff]
      %v1114 = vld [vmem:[%s318 + $0x10] sm:$0xff]
      %v1115 = vld [vmem:[%s318 + $0x18] sm:$0xff]
      %v1116 = vld [vmem:[%s318 + $0x20] sm:$0xff]
      %v1117 = vld [vmem:[%s318 + $0x28] sm:$0xff]
      %v1118 = vld [vmem:[%s318 + $0x30] sm:$0xff]
      %v1119 = vld [vmem:[%s318 + $0x38] sm:$0xff]
      %v1120 = vld [vmem:[%s318 + $0x40] sm:$0xff]
      %v1121 = vld [vmem:[%s318 + $0x48] sm:$0xff]
      %v1122 = vld [vmem:[%s318 + $0x50] sm:$0xff]
      %v1123 = vld [vmem:[%s318 + $0x58] sm:$0xff]
      %v1124 = vld [vmem:[%s318 + $0x60] sm:$0xff]
      %v1125 = vld [vmem:[%s318 + $0x68] sm:$0xff]
      %v1126 = vadd.f32 %v1112, %v1078
      %v1127 = vadd.f32 %v1113, %v1080
      %v1128 = vadd.f32 %v1114, %v1083
      %v1129 = vadd.f32 %v1115, %v1085
      %v1130 = vadd.f32 %v1116, %v1088
      %v1131 = vadd.f32 %v1117, %v1090
      %v1132 = vadd.f32 %v1118, %v1093
      %v1133 = vadd.f32 %v1119, %v1095
      %v1134 = vadd.f32 %v1120, %v1098
      %v1135 = vadd.f32 %v1121, %v1100
      %v1136 = vadd.f32 %v1122, %v1103
      %v1137 = vadd.f32 %v1123, %v1105
      %v1138 = vadd.f32 %v1124, %v1108
      %v1139 = vadd.f32 %v1125, %v1110
      %1140 = vst [vmem:[%s318] sm:$0xff] %v1126
      %1141 = vst [vmem:[%s318 + $0x8] sm:$0xff] %v1127
      %1142 = vst [vmem:[%s318 + $0x10] sm:$0xff] %v1128
      %1143 = vst [vmem:[%s318 + $0x18] sm:$0xff] %v1129
      %1144 = vst [vmem:[%s318 + $0x20] sm:$0xff] %v1130
      %1145 = vst [vmem:[%s318 + $0x28] sm:$0xff] %v1131
      %1146 = vst [vmem:[%s318 + $0x30] sm:$0xff] %v1132
      %1147 = vst [vmem:[%s318 + $0x38] sm:$0xff] %v1133
      %1148 = vst [vmem:[%s318 + $0x40] sm:$0xff] %v1134
      %1149 = vst [vmem:[%s318 + $0x48] sm:$0xff] %v1135
      %1150 = vst [vmem:[%s318 + $0x50] sm:$0xff] %v1136
      %1151 = vst [vmem:[%s318 + $0x58] sm:$0xff] %v1137
      %1152 = vst [vmem:[%s318 + $0x60] sm:$0xff] %v1138
      %1153 = vst [vmem:[%s318 + $0x68] sm:$0xff] %v1139
      %v1154 = vld [vmem:[%s305] sm:$0xf]
      %v1155 = vld [vmem:[%s305 + $0x4] sm:$0xf]
      %v1158 = vunpack.c.l.b16 %v1154
      %v1159 = vunpack.c.l.b16 %v1155
      %v1160 = vpack.c.b16 %v1159, %v1158
      %1162 = vmatpush.bf16.msra.mxu0 %v1059
      %1163 = vmatpush.bf16.msra.mxu0 %v1058
      %1164 = vmatpush.bf16.msra.mxu0 %v1057
      %1165 = vmatpush.bf16.msra.mxu0 %v1056
      %1166 = vmatpush.bf16.msra.mxu0 %v1055
      %1167 = vmatpush.bf16.msra.mxu0 %v1054
      %1168 = vmatpush.bf16.msra.mxu0 %v1053
      %1169 = vmatpush.bf16.msra.mxu0 %v1052
      %1170 = vmatmul.bf16.gmra.mxu0 %v1160
      %v1171 = vpop.f32.mrf.mxu0
      %v1172 = vadd.f32 0.0, %v1171
      %v1173 = vpop.f32.mrf.mxu0
      %v1174 = vadd.f32 0.0, %v1173
      %1175 = vdwg.mxu0
      %s1176 = scalar_lea.vmem %s318, 112
      %v1177 = vld [vmem:[%s1176] sm:$0xff]
      %v1178 = vld [vmem:[%s1176 + $0x8] sm:$0xff]
      %v1179 = vadd.f32 %v1177, %v1172
      %v1180 = vadd.f32 %v1178, %v1174
      %1181 = vst [vmem:[%s1176] sm:$0xff] %v1179
      %1182 = vst [vmem:[%s1176 + $0x8] sm:$0xff] %v1180
      %s1183 = scalar_lea.vmem %s2, 192
      %v1184 = vld [vmem:[%s1183] sm:$0xf]
      %v1185 = vld [vmem:[%s1183 + $0x4] sm:$0xf]
      %v1186 = vld [vmem:[%s1183 + $0x8] sm:$0xf]
      %v1187 = vld [vmem:[%s1183 + $0xc] sm:$0xf]
      %v1188 = vld [vmem:[%s1183 + $0x10] sm:$0xf]
      %v1189 = vld [vmem:[%s1183 + $0x14] sm:$0xf]
      %v1190 = vld [vmem:[%s1183 + $0x18] sm:$0xf]
      %v1191 = vld [vmem:[%s1183 + $0x1c] sm:$0xf]
      %v1192 = vld [vmem:[%s1183 + $0x20] sm:$0xf]
      %v1193 = vld [vmem:[%s1183 + $0x24] sm:$0xf]
      %v1194 = vld [vmem:[%s1183 + $0x28] sm:$0xf]
      %v1195 = vld [vmem:[%s1183 + $0x2c] sm:$0xf]
      %v1196 = vld [vmem:[%s1183 + $0x30] sm:$0xf]
      %v1197 = vld [vmem:[%s1183 + $0x34] sm:$0xf]
      %v1198 = vld [vmem:[%s1183 + $0x38] sm:$0xf]
      %v1199 = vld [vmem:[%s1183 + $0x3c] sm:$0xf]
      %v1200 = vld [vmem:[%s963] sm:$0xf]
      %v1201 = vld [vmem:[%s963 + $0x4] sm:$0xf]
      %v1202 = vld [vmem:[%s963 + $0x8] sm:$0x1]
      %v1203 = vld [vmem:[%s963 + $0xc] sm:$0xf]
      %v1204 = vld [vmem:[%s963 + $0x10] sm:$0xf]
      %v1205 = vld [vmem:[%s963 + $0x14] sm:$0x1]
      %v1206 = vld [vmem:[%s963 + $0x18] sm:$0xf]
      %v1207 = vld [vmem:[%s963 + $0x1c] sm:$0xf]
      %v1208 = vld [vmem:[%s963 + $0x20] sm:$0x1]
      %v1209 = vld [vmem:[%s963 + $0x24] sm:$0xf]
      %v1210 = vld [vmem:[%s963 + $0x28] sm:$0xf]
      %v1211 = vld [vmem:[%s963 + $0x2c] sm:$0x1]
      %v1212 = vld [vmem:[%s963 + $0x30] sm:$0xf]
      %v1213 = vld [vmem:[%s963 + $0x34] sm:$0xf]
      %v1214 = vld [vmem:[%s963 + $0x38] sm:$0x1]
      %v1215 = vld [vmem:[%s963 + $0x3c] sm:$0xf]
      %v1216 = vld [vmem:[%s963 + $0x40] sm:$0xf]
      %v1217 = vld [vmem:[%s963 + $0x44] sm:$0x1]
      %v1218 = vld [vmem:[%s963 + $0x48] sm:$0xf]
      %v1219 = vld [vmem:[%s963 + $0x4c] sm:$0xf]
      %v1220 = vld [vmem:[%s963 + $0x50] sm:$0x1]
      %v1222 = vshrl.u32 %v1200, 16
      %v1224 = vrot.slane %v1222, 4
      %v1225 = vshll.u32 %v1200, 16
      %v1227 = vrot.slane %v1225, 5
      %v1228 = vor.u32 %v1224, %v1227
      %v1229 = vrot.slane %v1228, 4
      %v1231 = vshll.u32 %v1201, 16
      %v1233 = vrot.slane %v1231, 5
      %v1234 = vsel %vm576, %v1229, %v1233
      %v1235 = vshrl.u32 %v1201, 16
      %v1237 = vrot.slane %v1235, 4
      %v1238 = vor.u32 %v1237, %v1233
      %v1239 = vrot.slane %v1238, 4
      %v1241 = vshll.u32 %v1202, 16
      %v1243 = vrot.slane %v1241, 5
      %v1244 = vsel %vm576, %v1239, %v1243
      %v1246 = vshrl.u32 %v1203, 16
      %v1248 = vrot.slane %v1246, 4
      %v1249 = vshll.u32 %v1203, 16
      %v1251 = vrot.slane %v1249, 5
      %v1252 = vor.u32 %v1248, %v1251
      %v1253 = vrot.slane %v1252, 4
      %v1255 = vshll.u32 %v1204, 16
      %v1257 = vrot.slane %v1255, 5
      %v1258 = vsel %vm576, %v1253, %v1257
      %v1259 = vshrl.u32 %v1204, 16
      %v1261 = vrot.slane %v1259, 4
      %v1262 = vor.u32 %v1261, %v1257
      %v1263 = vrot.slane %v1262, 4
      %v1265 = vshll.u32 %v1205, 16
      %v1267 = vrot.slane %v1265, 5
      %v1268 = vsel %vm576, %v1263, %v1267
      %v1270 = vshrl.u32 %v1206, 16
      %v1272 = vrot.slane %v1270, 4
      %v1273 = vshll.u32 %v1206, 16
      %v1275 = vrot.slane %v1273, 5
      %v1276 = vor.u32 %v1272, %v1275
      %v1277 = vrot.slane %v1276, 4
      %v1279 = vshll.u32 %v1207, 16
      %v1281 = vrot.slane %v1279, 5
      %v1282 = vsel %vm576, %v1277, %v1281
      %v1283 = vshrl.u32 %v1207, 16
      %v1285 = vrot.slane %v1283, 4
      %v1286 = vor.u32 %v1285, %v1281
      %v1287 = vrot.slane %v1286, 4
      %v1289 = vshll.u32 %v1208, 16
      %v1291 = vrot.slane %v1289, 5
      %v1292 = vsel %vm576, %v1287, %v1291
      %v1294 = vshrl.u32 %v1209, 16
      %v1296 = vrot.slane %v1294, 4
      %v1297 = vshll.u32 %v1209, 16
      %v1299 = vrot.slane %v1297, 5
      %v1300 = vor.u32 %v1296, %v1299
      %v1301 = vrot.slane %v1300, 4
      %v1303 = vshll.u32 %v1210, 16
      %v1305 = vrot.slane %v1303, 5
      %v1306 = vsel %vm576, %v1301, %v1305
      %v1307 = vshrl.u32 %v1210, 16
      %v1309 = vrot.slane %v1307, 4
      %v1310 = vor.u32 %v1309, %v1305
      %v1311 = vrot.slane %v1310, 4
      %v1313 = vshll.u32 %v1211, 16
      %v1315 = vrot.slane %v1313, 5
      %v1316 = vsel %vm576, %v1311, %v1315
      %v1318 = vshrl.u32 %v1212, 16
      %v1320 = vrot.slane %v1318, 4
      %v1321 = vshll.u32 %v1212, 16
      %v1323 = vrot.slane %v1321, 5
      %v1324 = vor.u32 %v1320, %v1323
      %v1325 = vrot.slane %v1324, 4
      %v1327 = vshll.u32 %v1213, 16
      %v1329 = vrot.slane %v1327, 5
      %v1330 = vsel %vm576, %v1325, %v1329
      %v1331 = vshrl.u32 %v1213, 16
      %v1333 = vrot.slane %v1331, 4
      %v1334 = vor.u32 %v1333, %v1329
      %v1335 = vrot.slane %v1334, 4
      %v1337 = vshll.u32 %v1214, 16
      %v1339 = vrot.slane %v1337, 5
      %v1340 = vsel %vm576, %v1335, %v1339
      %v1342 = vshrl.u32 %v1215, 16
      %v1344 = vrot.slane %v1342, 4
      %v1345 = vshll.u32 %v1215, 16
      %v1347 = vrot.slane %v1345, 5
      %v1348 = vor.u32 %v1344, %v1347
      %v1349 = vrot.slane %v1348, 4
      %v1351 = vshll.u32 %v1216, 16
      %v1353 = vrot.slane %v1351, 5
      %v1354 = vsel %vm576, %v1349, %v1353
      %v1355 = vshrl.u32 %v1216, 16
      %v1357 = vrot.slane %v1355, 4
      %v1358 = vor.u32 %v1357, %v1353
      %v1359 = vrot.slane %v1358, 4
      %v1361 = vshll.u32 %v1217, 16
      %v1363 = vrot.slane %v1361, 5
      %v1364 = vsel %vm576, %v1359, %v1363
      %v1366 = vshrl.u32 %v1218, 16
      %v1368 = vrot.slane %v1366, 4
      %v1369 = vshll.u32 %v1218, 16
      %v1371 = vrot.slane %v1369, 5
      %v1372 = vor.u32 %v1368, %v1371
      %v1373 = vrot.slane %v1372, 4
      %v1375 = vshll.u32 %v1219, 16
      %v1377 = vrot.slane %v1375, 5
      %v1378 = vsel %vm576, %v1373, %v1377
      %v1379 = vshrl.u32 %v1219, 16
      %v1381 = vrot.slane %v1379, 4
      %v1382 = vor.u32 %v1381, %v1377
      %v1383 = vrot.slane %v1382, 4
      %v1385 = vshll.u32 %v1220, 16
      %v1387 = vrot.slane %v1385, 5
      %v1388 = vsel %vm576, %v1383, %v1387
      %v1389 = vunpack.c.l.b16 %v1234
      %v1390 = vunpack.c.l.b16 %v1244
      %v1391 = vunpack.c.l.b16 %v1258
      %v1392 = vunpack.c.l.b16 %v1268
      %v1393 = vunpack.c.l.b16 %v1282
      %v1394 = vunpack.c.l.b16 %v1292
      %v1395 = vunpack.c.l.b16 %v1306
      %v1396 = vunpack.c.l.b16 %v1316
      %v1397 = vunpack.c.l.b16 %v1330
      %v1398 = vunpack.c.l.b16 %v1340
      %v1399 = vunpack.c.l.b16 %v1354
      %v1400 = vunpack.c.l.b16 %v1364
      %v1401 = vunpack.c.l.b16 %v1378
      %v1402 = vunpack.c.l.b16 %v1388
      %v1403 = vpack.c.b16 %v1390, %v1389
      %v1404 = vpack.c.b16 %v1392, %v1391
      %v1405 = vpack.c.b16 %v1394, %v1393
      %v1406 = vpack.c.b16 %v1396, %v1395
      %v1407 = vpack.c.b16 %v1398, %v1397
      %v1408 = vpack.c.b16 %v1400, %v1399
      %v1409 = vpack.c.b16 %v1402, %v1401
      %v1433 = vunpack.c.l.b16 %v1184
      %v1434 = vunpack.c.l.b16 %v1185
      %v1435 = vunpack.c.l.b16 %v1186
      %v1436 = vunpack.c.l.b16 %v1187
      %v1437 = vunpack.c.l.b16 %v1188
      %v1438 = vunpack.c.l.b16 %v1189
      %v1439 = vunpack.c.l.b16 %v1190
      %v1440 = vunpack.c.l.b16 %v1191
      %v1441 = vunpack.c.l.b16 %v1192
      %v1442 = vunpack.c.l.b16 %v1193
      %v1443 = vunpack.c.l.b16 %v1194
      %v1444 = vunpack.c.l.b16 %v1195
      %v1445 = vunpack.c.l.b16 %v1196
      %v1446 = vunpack.c.l.b16 %v1197
      %v1447 = vunpack.c.l.b16 %v1198
      %v1448 = vunpack.c.l.b16 %v1199
      %v1449 = vpack.c.b16 %v1434, %v1433
      %v1450 = vpack.c.b16 %v1436, %v1435
      %v1451 = vpack.c.b16 %v1438, %v1437
      %v1452 = vpack.c.b16 %v1440, %v1439
      %v1453 = vpack.c.b16 %v1442, %v1441
      %v1454 = vpack.c.b16 %v1444, %v1443
      %v1455 = vpack.c.b16 %v1446, %v1445
      %v1456 = vpack.c.b16 %v1448, %v1447
      %1465 = vmatpush.bf16.msra.mxu0 %v1456
      %1466 = vmatpush.bf16.msra.mxu0 %v1455
      %1467 = vmatpush.bf16.msra.mxu0 %v1454
      %1468 = vmatpush.bf16.msra.mxu0 %v1453
      %1469 = vmatpush.bf16.msra.mxu0 %v1452
      %1470 = vmatpush.bf16.msra.mxu0 %v1451
      %1471 = vmatpush.bf16.msra.mxu0 %v1450
      %1472 = vmatpush.bf16.msra.mxu0 %v1449
      %1473 = vmatmul.bf16.gmra.mxu0 %v1403
      %v1474 = vpop.f32.mrf.mxu0
      %v1475 = vadd.f32 0.0, %v1474
      %v1476 = vpop.f32.mrf.mxu0
      %v1477 = vadd.f32 0.0, %v1476
      %1478 = vmatmul.bf16.gmra.mxu0 %v1404
      %v1479 = vpop.f32.mrf.mxu0
      %v1480 = vadd.f32 0.0, %v1479
      %v1481 = vpop.f32.mrf.mxu0
      %v1482 = vadd.f32 0.0, %v1481
      %1483 = vmatmul.bf16.gmra.mxu0 %v1405
      %v1484 = vpop.f32.mrf.mxu0
      %v1485 = vadd.f32 0.0, %v1484
      %v1486 = vpop.f32.mrf.mxu0
      %v1487 = vadd.f32 0.0, %v1486
      %1488 = vmatmul.bf16.gmra.mxu0 %v1406
      %v1489 = vpop.f32.mrf.mxu0
      %v1490 = vadd.f32 0.0, %v1489
      %v1491 = vpop.f32.mrf.mxu0
      %v1492 = vadd.f32 0.0, %v1491
      %1493 = vmatmul.bf16.gmra.mxu0 %v1407
      %v1494 = vpop.f32.mrf.mxu0
      %v1495 = vadd.f32 0.0, %v1494
      %v1496 = vpop.f32.mrf.mxu0
      %v1497 = vadd.f32 0.0, %v1496
      %1498 = vmatmul.bf16.gmra.mxu0 %v1408
      %v1499 = vpop.f32.mrf.mxu0
      %v1500 = vadd.f32 0.0, %v1499
      %v1501 = vpop.f32.mrf.mxu0
      %v1502 = vadd.f32 0.0, %v1501
      %1503 = vmatmul.bf16.gmra.mxu0 %v1409
      %v1504 = vpop.f32.mrf.mxu0
      %v1505 = vadd.f32 0.0, %v1504
      %v1506 = vpop.f32.mrf.mxu0
      %v1507 = vadd.f32 0.0, %v1506
      %1508 = vdwg.mxu0
      %v1509 = vld [vmem:[%s318] sm:$0xff]
      %v1510 = vld [vmem:[%s318 + $0x8] sm:$0xff]
      %v1511 = vld [vmem:[%s318 + $0x10] sm:$0xff]
      %v1512 = vld [vmem:[%s318 + $0x18] sm:$0xff]
      %v1513 = vld [vmem:[%s318 + $0x20] sm:$0xff]
      %v1514 = vld [vmem:[%s318 + $0x28] sm:$0xff]
      %v1515 = vld [vmem:[%s318 + $0x30] sm:$0xff]
      %v1516 = vld [vmem:[%s318 + $0x38] sm:$0xff]
      %v1517 = vld [vmem:[%s318 + $0x40] sm:$0xff]
      %v1518 = vld [vmem:[%s318 + $0x48] sm:$0xff]
      %v1519 = vld [vmem:[%s318 + $0x50] sm:$0xff]
      %v1520 = vld [vmem:[%s318 + $0x58] sm:$0xff]
      %v1521 = vld [vmem:[%s318 + $0x60] sm:$0xff]
      %v1522 = vld [vmem:[%s318 + $0x68] sm:$0xff]
      %v1523 = vadd.f32 %v1509, %v1475
      %v1524 = vadd.f32 %v1510, %v1477
      %v1525 = vadd.f32 %v1511, %v1480
      %v1526 = vadd.f32 %v1512, %v1482
      %v1527 = vadd.f32 %v1513, %v1485
      %v1528 = vadd.f32 %v1514, %v1487
      %v1529 = vadd.f32 %v1515, %v1490
      %v1530 = vadd.f32 %v1516, %v1492
      %v1531 = vadd.f32 %v1517, %v1495
      %v1532 = vadd.f32 %v1518, %v1497
      %v1533 = vadd.f32 %v1519, %v1500
      %v1534 = vadd.f32 %v1520, %v1502
      %v1535 = vadd.f32 %v1521, %v1505
      %v1536 = vadd.f32 %v1522, %v1507
      %1537 = vst [vmem:[%s318] sm:$0xff] %v1523
      %1538 = vst [vmem:[%s318 + $0x8] sm:$0xff] %v1524
      %1539 = vst [vmem:[%s318 + $0x10] sm:$0xff] %v1525
      %1540 = vst [vmem:[%s318 + $0x18] sm:$0xff] %v1526
      %1541 = vst [vmem:[%s318 + $0x20] sm:$0xff] %v1527
      %1542 = vst [vmem:[%s318 + $0x28] sm:$0xff] %v1528
      %1543 = vst [vmem:[%s318 + $0x30] sm:$0xff] %v1529
      %1544 = vst [vmem:[%s318 + $0x38] sm:$0xff] %v1530
      %1545 = vst [vmem:[%s318 + $0x40] sm:$0xff] %v1531
      %1546 = vst [vmem:[%s318 + $0x48] sm:$0xff] %v1532
      %1547 = vst [vmem:[%s318 + $0x50] sm:$0xff] %v1533
      %1548 = vst [vmem:[%s318 + $0x58] sm:$0xff] %v1534
      %1549 = vst [vmem:[%s318 + $0x60] sm:$0xff] %v1535
      %1550 = vst [vmem:[%s318 + $0x68] sm:$0xff] %v1536
      %v1551 = vld [vmem:[%s305] sm:$0xf]
      %v1552 = vld [vmem:[%s305 + $0x4] sm:$0xf]
      %v1553 = vld [vmem:[%s305 + $0x8] sm:$0x1]
      %v1557 = vunpack.c.l.b16 %v1551
      %v1558 = vunpack.c.l.b16 %v1552
      %v1559 = vunpack.c.l.b16 %v1553
      %v1560 = vpack.c.b16 %v1558, %v1557
      %v1561 = vpack.c.b16 %v1559, %v1559
      %vm1562 = vsmask.f32 7424
      %v1564 = vshrl.u32 %v1560, 16
      %v1566 = vshll.u32 %v1560, 16
      %v1568 = vrot.slane %v1566, 1
      %v1569 = vor.u32 %v1564, %v1568
      %v1571 = vshll.u32 %v1561, 16
      %v1573 = vrot.slane %v1571, 1
      %v1574 = vsel %vm1562, %v1569, %v1573
      %1576 = vmatpush.bf16.msra.mxu0 %v1456
      %1577 = vmatpush.bf16.msra.mxu0 %v1455
      %1578 = vmatpush.bf16.msra.mxu0 %v1454
      %1579 = vmatpush.bf16.msra.mxu0 %v1453
      %1580 = vmatpush.bf16.msra.mxu0 %v1452
      %1581 = vmatpush.bf16.msra.mxu0 %v1451
      %1582 = vmatpush.bf16.msra.mxu0 %v1450
      %1583 = vmatpush.bf16.msra.mxu0 %v1449
      %1584 = vmatmul.bf16.gmra.mxu0 %v1574
      %v1585 = vpop.f32.mrf.mxu0
      %v1586 = vadd.f32 0.0, %v1585
      %v1587 = vpop.f32.mrf.mxu0
      %v1588 = vadd.f32 0.0, %v1587
      %1589 = vdwg.mxu0
      %v1590 = vld [vmem:[%s1176] sm:$0xff]
      %v1591 = vld [vmem:[%s1176 + $0x8] sm:$0xff]
      %v1592 = vadd.f32 %v1590, %v1586
      %v1593 = vadd.f32 %v1591, %v1588
      %1594 = vst [vmem:[%s1176] sm:$0xff] %v1592
      %1595 = vst [vmem:[%s1176 + $0x8] sm:$0xff] %v1593
      %s1596 = smul.u32 8, %s19
      %p1597 = scmp.lt.s32.totalorder %s20, 1
      %s1598 = scalar_select %p1597, %s20, 1
      %p1599 = scmp.lt.s32.totalorder %s1596, 15
      %s1600 = scalar_select %p1599, %s1596, 15
      %s1601 = smul.addr %s1600, 2
      %s1602 = smul.addr %s1598, 32
      %s1603 = sadd.s32 %s1601, %s1602
      %s1604 = smul.addr %s1603, 8
      %s1605 = scalar_lea.vmem %s4, %s1604
      // Predicated region
      $region37: #{upsample_forward.1} parent=35 // pred_check
        %p1606 = pneg %p149
      $region38: #{upsample_forward.1} parent=35 // pred_check_branch
        %1608 = sbr.rel (%p1606) target = $region40
      $region39: #{upsample_forward.1} parent=35 // pred_region
        %s1609 = smul.u32 8, %s19
      $region40: #{upsample_forward.1} parent=35 // pred_fallthru
        _
    $region36: #{upsample_forward.1} parent=5 // pred_fallthru
      _
    %p1610 = scmp.le.s32.totalorder 2, %s10
    // Predicated region
    $region41: #{upsample_forward.1} parent=5 // pred_check
      %p1611 = pneg %p1610
    $region42: #{upsample_forward.1} parent=5 // pred_check_branch
      %1613 = sbr.rel (%p1611) target = $region44
    $region43: #{upsample_forward.1} parent=5 // pred_region
      %s1614 = ssub.s32 %s10, 2
      // Predicated region
      $region45: #{upsample_forward.1} parent=43 // pred_check
        %p1615 = pneg %p155
      $region46: #{upsample_forward.1} parent=43 // pred_check_branch
        %1617 = sbr.rel (%p1615) target = $region48
      $region47: #{upsample_forward.1} parent=43 // pred_region
        %s1618 = smul.u32 8, %s21
        %p1619 = scmp.lt.s32.totalorder %s22, 1
        %s1620 = scalar_select %p1619, %s22, 1
        %p1621 = scmp.lt.s32.totalorder %s1618, 15
        %s1622 = scalar_select %p1621, %s1618, 15
        %s1623 = smul.addr %s1622, 2
        %s1624 = smul.addr %s1620, 32
        %s1625 = sadd.s32 %s1623, %s1624
        %s1626 = smul.addr %s1625, 8
        %s1627 = scalar_lea.vmem %s4, %s1626
      $region48: #{upsample_forward.1} parent=43 // pred_fallthru
        _
    $region44: #{upsample_forward.1} parent=5 // pred_fallthru
      _
  $region6: #{upsample_forward.1} parent=0 // loop_footer
    %s14 = sadd.s32 1, %s10
  $region7: #{upsample_forward.1} parent=0 // loop_footer_branch
    %9 = sbr.rel target = $region3
  $region8: #{upsample_forward.1} parent=0 // loop_exit
    _

</llo_original>
